<compile_context>
chip_gen: v7x
topology: tpu7x:2x2x1
jax: 0.10.0
libtpu: 0.0.40
codegen_flags: <defaults>
</compile_context>

<pallas_src>
import functools

import jax
import jax.numpy as jnp
from jax.experimental import pallas as pl
from jax.experimental.pallas import tpu as pltpu


def _erf_f32(z):
    # Abramowitz & Stegun 7.1.26 rational approximation, |err| <= 1.5e-7, so
    # the kernel matches PyTorch's exact (erf-based) nn.GELU().
    a1, a2, a3, a4, a5 = 0.254829592, -0.284496736, 1.421413741, -1.453152027, 1.061405429
    p = 0.3275911
    az = jnp.abs(z)
    t = 1.0 / (1.0 + p * az)
    poly = ((((a5 * t + a4) * t + a3) * t + a2) * t + a1) * t
    y = 1.0 - poly * jnp.exp(-az * az)
    return jnp.where(z >= 0.0, y, -y)


def _gelu_exact(z):
    return 0.5 * z * (1.0 + _erf_f32(z * 0.7071067811865476))


def _block_kernel(x_ref, nrm_ref, mmat_ref, wqkv_ref, bqkv_ref, hmask_ref,
                  wproj_ref, bproj_ref, wfc1_ref, bfc1_ref, wfc2_ref, bfc2_ref,
                  o_ref, *, n_tokens, lanes, eps):
    # Packed layout: lane index = g*D + d  (G samples side by side per row).
    Bg = x_ref.shape[0]
    T, L = n_tokens, lanes
    Rg = Bg * T

    x = x_ref[...].reshape(Rg, L).astype(jnp.float32)          # (Rg, L) residual input
    nrm = nrm_ref[...]                                         # (4, L): g1, b1, g2, b2 (tiled)
    mmat = mmat_ref[...]                                       # (L, L) per-sample mean matrix

    def layer_norm(z, g, b):
        # Segmented (per-sample, per-token) mean/var over D via a block-diag
        # mean matrix -> broadcast back across each sample's D lanes.  f32.
        mu = jnp.dot(z, mmat, preferred_element_type=jnp.float32)
        zc = z - mu
        var = jnp.dot(zc * zc, mmat, preferred_element_type=jnp.float32)
        return zc * jax.lax.rsqrt(var + eps) * g + b

    # ---- LayerNorm 1 + fused QKV projection (scale pre-folded into W_q/b_q) ----
    xn = layer_norm(x, nrm[0:1], nrm[1:2])                     # (Rg, L)
    qkv = jnp.dot(xn.astype(jnp.bfloat16), wqkv_ref[...],
                  preferred_element_type=jnp.float32) + bqkv_ref[...]   # (Rg, 3L)
    q = qkv[:, 0 * L:1 * L].reshape(Bg, T, L)
    k = qkv[:, 1 * L:2 * L].reshape(Bg, T, L)
    v = qkv[:, 2 * L:3 * L].reshape(Bg, T, L)

    # ---- multi-head attention: all heads & all packed samples at once ----
    # e[bg, t, s, :] = q[bg, t, :] * k[bg, s, :]   (lane-dense, L = 128)
    e = q[:, :, None, :] * k[:, None, :, :]                    # (Bg, T, T, L)
    # Block-diagonal (sample, head) mask: per-head dot products, replicated
    # across that head's head_dim lanes; samples never mix.
    scores = jnp.dot(e.reshape(Rg * T, L).astype(jnp.bfloat16), hmask_ref[...],
                     preferred_element_type=jnp.float32).reshape(Bg, T, T, L)

    # Softmax over the key axis (axis=2); scale already folded into W_q.
    scores = scores - jnp.max(scores, axis=2, keepdims=True)
    p = jnp.exp(scores)
    p = p * pl.reciprocal(jnp.sum(p, axis=2, keepdims=True), approx=True)

    # Weighted average: sum_s p[bg,t,s,:] * v[bg,s,:]
    wa = jnp.sum(p * v[:, None, :, :], axis=2)                 # (Bg, T, L)

    attn_out = jnp.dot(wa.reshape(Rg, L).astype(jnp.bfloat16), wproj_ref[...],
                       preferred_element_type=jnp.float32) + bproj_ref[...]
    y = x + attn_out                                           # residual 1

    # ---- LayerNorm 2 + MLP (exact GELU) ----
    yn = layer_norm(y, nrm[2:3], nrm[3:4])
    h = jnp.dot(yn.astype(jnp.bfloat16), wfc1_ref[...],
                preferred_element_type=jnp.float32) + bfc1_ref[...]
    h = _gelu_exact(h)
    m = jnp.dot(h.astype(jnp.bfloat16), wfc2_ref[...],
                preferred_element_type=jnp.float32) + bfc2_ref[...]
    out = y + m                                                # residual 2

    o_ref[...] = out.reshape(Bg, T, L).astype(o_ref.dtype)


def transformer_block(x, p, *, n_heads, block_groups=32, eps=1e-6):
    """Fused Block forward. x: (n_samples, h, w, n_tokens, dim)."""
    n, h, w, T, D = x.shape
    assert D % n_heads == 0
    hd = D // n_heads
    scale = hd ** -0.5
    Dh = p["w_fc1"].shape[1]

    # Lane-packing factor: minor dim becomes L = G*D = 128 (dense on all gens).
    G = 128 // D if (D < 128 and 128 % D == 0) else 1
    L, Lh = G * D, G * Dh

    B = n * h * w
    x_flat = x.reshape(B, T, D)                     # keep caller dtype (no f32 promote)

    Bg = -(-B // G)                                 # number of sample groups
    blk = min(block_groups, max(1, Bg // 2))        # >=2 grid steps when possible (v7x: 2 TCs)
    Bg_pad = -(-Bg // blk) * blk
    B_pad = Bg_pad * G
    if B_pad != B:
        x_flat = jnp.pad(x_flat, ((0, B_pad - B), (0, 0), (0, 0)))

    # Pack G samples along lanes: (Bg_pad, T, G*D), lane = g*D + d.
    xp = x_flat.reshape(Bg_pad, G, T, D).transpose(0, 2, 1, 3).reshape(Bg_pad, T, L)

    f32, bf16 = jnp.float32, jnp.bfloat16
    eye_g = jnp.eye(G, dtype=f32)

    def kron_pack(wm):                              # (a, b) -> block-diag (G*a, G*b)
        return jnp.kron(eye_g, wm.astype(f32))

    def tile_g(vec):                                # (a,) -> (G*a,)
        return jnp.tile(vec.astype(f32), G)

    # Packed params (constant transforms, done once in the wrapper).
    wq = p["w_qkv"][:, 0 * D:1 * D] * scale         # fold attention scale into W_q / b_q
    wk = p["w_qkv"][:, 1 * D:2 * D]
    wv = p["w_qkv"][:, 2 * D:3 * D]
    bq = p["b_qkv"][0 * D:1 * D] * scale
    bk = p["b_qkv"][1 * D:2 * D]
    bv = p["b_qkv"][2 * D:3 * D]

    w_qkv_p = jnp.concatenate(
        [kron_pack(wq), kron_pack(wk), kron_pack(wv)], axis=1).astype(bf16)        # (L, 3L)
    b_qkv_p = jnp.concatenate([tile_g(bq), tile_g(bk), tile_g(bv)]).reshape(1, 3 * L)
    # Block-diagonal (sample, head) grouping mask.
    hmask_p = jnp.kron(jnp.eye(G * n_heads, dtype=f32),
                       jnp.ones((hd, hd), f32)).astype(bf16)                       # (L, L)
    w_proj_p = kron_pack(p["w_proj"]).astype(bf16)                                 # (L, L)
    b_proj_p = tile_g(p["b_proj"]).reshape(1, L)
    w_fc1_p = kron_pack(p["w_fc1"]).astype(bf16)                                   # (L, Lh)
    b_fc1_p = tile_g(p["b_fc1"]).reshape(1, Lh)
    w_fc2_p = kron_pack(p["w_fc2"]).astype(bf16)                                   # (Lh, L)
    b_fc2_p = tile_g(p["b_fc2"]).reshape(1, L)
    mean_mat = jnp.kron(eye_g, jnp.full((D, D), 1.0 / D, f32))                     # (L, L) f32
    nrm = jnp.stack([tile_g(p["g1"]), tile_g(p["b1"]),
                     tile_g(p["g2"]), tile_g(p["b2"])])                            # (4, L) f32

    kernel = functools.partial(_block_kernel, n_tokens=T, lanes=L, eps=eps)

    out = pl.pallas_call(
        kernel,
        out_shape=jax.ShapeDtypeStruct((Bg_pad, T, L), x.dtype),
        grid_spec=pltpu.PrefetchScalarGridSpec(
            num_scalar_prefetch=0,
            grid=(Bg_pad // blk,),
            in_specs=[
                pl.BlockSpec((blk, T, L), lambda i: (i, 0, 0)),   # x (lane-packed block)
                pl.BlockSpec((4, L), lambda i: (0, 0)),           # layernorm params (tiled)
                pl.BlockSpec((L, L), lambda i: (0, 0)),           # per-sample mean matrix
                pl.BlockSpec((L, 3 * L), lambda i: (0, 0)),       # fused W_qkv (block-diag)
                pl.BlockSpec((1, 3 * L), lambda i: (0, 0)),       # fused b_qkv
                pl.BlockSpec((L, L), lambda i: (0, 0)),           # head mask
                pl.BlockSpec((L, L), lambda i: (0, 0)),           # W_proj (block-diag)
                pl.BlockSpec((1, L), lambda i: (0, 0)),           # b_proj
                pl.BlockSpec((L, Lh), lambda i: (0, 0)),          # W_fc1 (block-diag)
                pl.BlockSpec((1, Lh), lambda i: (0, 0)),          # b_fc1
                pl.BlockSpec((Lh, L), lambda i: (0, 0)),          # W_fc2 (block-diag)
                pl.BlockSpec((1, L), lambda i: (0, 0)),           # b_fc2
            ],
            out_specs=pl.BlockSpec((blk, T, L), lambda i: (i, 0, 0)),
        ),
        compiler_params=pltpu.CompilerParams(
            dimension_semantics=("parallel",),      # blocks independent (v7x: 2 TCs)
            vmem_limit_bytes=32 * 1024 * 1024),
    )(xp, nrm, mean_mat, w_qkv_p, b_qkv_p, hmask_p,
      w_proj_p, b_proj_p, w_fc1_p, b_fc1_p, w_fc2_p, b_fc2_p)

    # Unpack lanes back to (B, T, D) and strip padding.
    out = out.reshape(Bg_pad, T, G, D).transpose(0, 2, 1, 3).reshape(B_pad, T, D)
    return out[:B].reshape(n, h, w, T, D)


def block_ref(x, p, *, n_heads, eps=1e-6):
    """Pure-JAX reference mirroring the PyTorch Block forward exactly."""
    def ln(z, g, b):
        mu = jnp.mean(z, axis=-1, keepdims=True)
        var = jnp.mean((z - mu) ** 2, axis=-1, keepdims=True)
        return (z - mu) * jax.lax.rsqrt(var + eps) * g + b

    def attn(z):
        n, h, w, t, d = z.shape
        hd = d // n_heads
        scale = hd ** -0.5
        qkv = jnp.einsum("...i,io->...o", z, p["w_qkv"]) + p["b_qkv"]
        qkv = qkv.reshape(n, h, w, t, 3, n_heads, hd)
        qkv = jnp.transpose(qkv, (4, 0, 1, 2, 5, 3, 6))
        q, k, v = qkv[0], qkv[1], qkv[2]
        dp = jnp.einsum("...td,...sd->...ts", q, k) * scale
        a = jax.nn.softmax(dp, axis=-1)
        wa = jnp.einsum("...ts,...sd->...td", a, v)
        wa = jnp.transpose(wa, (0, 1, 2, 4, 3, 5)).reshape(n, h, w, t, d)
        return jnp.einsum("...i,io->...o", wa, p["w_proj"]) + p["b_proj"]

    def mlp(z):
        hh = jnp.einsum("...i,io->...o", z, p["w_fc1"]) + p["b_fc1"]
        hh = jax.nn.gelu(hh, approximate=False)
        return jnp.einsum("...i,io->...o", hh, p["w_fc2"]) + p["b_fc2"]

    x = x + attn(ln(x, p["g1"], p["b1"]))
    x = x + mlp(ln(x, p["g2"], p["b2"]))
    return x


if __name__ == "__main__":
    # Small shapes consistent with the module (dim divisible by n_heads).
    n_samples, H, W, n_tokens, dim = 2, 2, 2, 8, 32
    n_heads, mlp_ratio = 4, 4.0
    hidden = int(dim * mlp_ratio)

    key = jax.random.PRNGKey(0)
    ks = jax.random.split(key, 13)

    x = jax.random.normal(ks[0], (n_samples, H, W, n_tokens, dim), dtype=jnp.float32)
    params = dict(
        g1=1.0 + 0.1 * jax.random.normal(ks[1], (dim,), jnp.float32),
        b1=0.1 * jax.random.normal(ks[2], (dim,), jnp.float32),
        g2=1.0 + 0.1 * jax.random.normal(ks[3], (dim,), jnp.float32),
        b2=0.1 * jax.random.normal(ks[4], (dim,), jnp.float32),
        w_qkv=0.05 * jax.random.normal(ks[5], (dim, 3 * dim), jnp.float32),
        b_qkv=0.05 * jax.random.normal(ks[6], (3 * dim,), jnp.float32),
        w_proj=0.05 * jax.random.normal(ks[7], (dim, dim), jnp.float32),
        b_proj=0.05 * jax.random.normal(ks[8], (dim,), jnp.float32),
        w_fc1=0.05 * jax.random.normal(ks[9], (dim, hidden), jnp.float32),
        b_fc1=0.05 * jax.random.normal(ks[10], (hidden,), jnp.float32),
        w_fc2=0.05 * jax.random.normal(ks[11], (hidden, dim), jnp.float32),
        b_fc2=0.05 * jax.random.normal(ks[12], (dim,), jnp.float32),
    )

    out = transformer_block(x, params, n_heads=n_heads)
    out = jax.block_until_ready(out)

    ref = block_ref(x, params, n_heads=n_heads)
    assert out.shape == x.shape
    max_err = jnp.max(jnp.abs(out - ref))
    # Tolerance accounts for bf16 MXU operands and the EUP approximate
    # reciprocal in the softmax (VPU / LayerNorm stats stay f32).
    assert jnp.allclose(out, ref, atol=1e-2, rtol=1e-2), f"max err {max_err}"

    print("KERNEL_OK")
</pallas_src>

<mosaic_0001>
module attributes {stable_mosaic.version = 11 : i64} {
  func.func @_block_kernel(%arg0: i32, %arg1: memref<1x8x128xf32, #tpu.memory_space<vmem>>, %arg2: memref<4x128xf32, #tpu.memory_space<vmem>>, %arg3: memref<128x128xf32, #tpu.memory_space<vmem>>, %arg4: memref<128x384xbf16, #tpu.memory_space<vmem>>, %arg5: memref<1x384xf32, #tpu.memory_space<vmem>>, %arg6: memref<128x128xbf16, #tpu.memory_space<vmem>>, %arg7: memref<128x128xbf16, #tpu.memory_space<vmem>>, %arg8: memref<1x128xf32, #tpu.memory_space<vmem>>, %arg9: memref<128x512xbf16, #tpu.memory_space<vmem>>, %arg10: memref<1x512xf32, #tpu.memory_space<vmem>>, %arg11: memref<512x128xbf16, #tpu.memory_space<vmem>>, %arg12: memref<1x128xf32, #tpu.memory_space<vmem>>, %arg13: memref<1x8x128xf32, #tpu.memory_space<vmem>>) attributes {dimension_semantics = [#tpu.dimension_semantics<parallel>], iteration_bounds = array<i64: 2>, scalar_prefetch = 0 : i64, scratch_operands = 0 : i64, tpu.core_type = #tpu.core_type<tc>, window_params = [{transform_indices = @transform_0, window_bounds = array<i64: 1, 8, 128>}, {pipeline_mode = #tpu.pipeline_mode<synchronous>, transform_indices = @transform_1, window_bounds = array<i64: 4, 128>}, {pipeline_mode = #tpu.pipeline_mode<synchronous>, transform_indices = @transform_2, window_bounds = array<i64: 128, 128>}, {pipeline_mode = #tpu.pipeline_mode<synchronous>, transform_indices = @transform_3, window_bounds = array<i64: 128, 384>}, {pipeline_mode = #tpu.pipeline_mode<synchronous>, transform_indices = @transform_4, window_bounds = array<i64: 1, 384>}, {pipeline_mode = #tpu.pipeline_mode<synchronous>, transform_indices = @transform_5, window_bounds = array<i64: 128, 128>}, {pipeline_mode = #tpu.pipeline_mode<synchronous>, transform_indices = @transform_6, window_bounds = array<i64: 128, 128>}, {pipeline_mode = #tpu.pipeline_mode<synchronous>, transform_indices = @transform_7, window_bounds = array<i64: 1, 128>}, {pipeline_mode = #tpu.pipeline_mode<synchronous>, transform_indices = @transform_8, window_bounds = array<i64: 128, 512>}, {pipeline_mode = #tpu.pipeline_mode<synchronous>, transform_indices = @transform_9, window_bounds = array<i64: 1, 512>}, {pipeline_mode = #tpu.pipeline_mode<synchronous>, transform_indices = @transform_10, window_bounds = array<i64: 512, 128>}, {pipeline_mode = #tpu.pipeline_mode<synchronous>, transform_indices = @transform_11, window_bounds = array<i64: 1, 128>}, {transform_indices = @transform_12, window_bounds = array<i64: 1, 8, 128>}]} {
    %c0 = arith.constant 0 : index
    %c0_0 = arith.constant 0 : index
    %c0_1 = arith.constant 0 : index
    %0 = vector.load %arg1[%c0, %c0_0, %c0_1] : memref<1x8x128xf32, #tpu.memory_space<vmem>>, vector<1x8x128xf32>
    %1 = vector.shape_cast %0 : vector<1x8x128xf32> to vector<8x128xf32>
    %c0_2 = arith.constant 0 : index
    %c0_3 = arith.constant 0 : index
    %2 = vector.load %arg2[%c0_2, %c0_3] : memref<4x128xf32, #tpu.memory_space<vmem>>, vector<4x128xf32>
    %c0_4 = arith.constant 0 : index
    %c0_5 = arith.constant 0 : index
    %3 = vector.load %arg3[%c0_4, %c0_5] : memref<128x128xf32, #tpu.memory_space<vmem>>, vector<128x128xf32>
    %4 = vector.extract_strided_slice %2 {offsets = [0, 0], sizes = [1, 128], strides = [1, 1]} : vector<4x128xf32> to vector<1x128xf32>
    %5 = vector.extract_strided_slice %2 {offsets = [1, 0], sizes = [1, 128], strides = [1, 1]} : vector<4x128xf32> to vector<1x128xf32>
    %cst = arith.constant dense<0.000000e+00> : vector<8x128xf32>
    %6 = tpu.matmul %1, %3, %cst {dimension_numbers = #tpu.dot_dimension_numbers<[1], [0], [0], [1], [0, 0, 1, 1], [], []>} : vector<8x128xf32>, vector<128x128xf32>, vector<8x128xf32> -> vector<8x128xf32>
    %7 = arith.subf %1, %6 : vector<8x128xf32>
    %8 = arith.mulf %7, %7 : vector<8x128xf32>
    %cst_6 = arith.constant dense<0.000000e+00> : vector<8x128xf32>
    %9 = tpu.matmul %8, %3, %cst_6 {dimension_numbers = #tpu.dot_dimension_numbers<[1], [0], [0], [1], [0, 0, 1, 1], [], []>} : vector<8x128xf32>, vector<128x128xf32>, vector<8x128xf32> -> vector<8x128xf32>
    %cst_7 = arith.constant 9.99999997E-7 : f32
    %10 = vector.broadcast %cst_7 : f32 to vector<8x128xf32>
    %11 = arith.addf %9, %10 : vector<8x128xf32>
    %12 = math.rsqrt %11 : vector<8x128xf32>
    %13 = arith.mulf %7, %12 : vector<8x128xf32>
    %14 = vector.broadcast %4 : vector<1x128xf32> to vector<8x128xf32>
    %15 = arith.mulf %13, %14 : vector<8x128xf32>
    %16 = vector.broadcast %5 : vector<1x128xf32> to vector<8x128xf32>
    %17 = arith.addf %15, %16 : vector<8x128xf32>
    %18 = arith.truncf %17 : vector<8x128xf32> to vector<8x128xbf16>
    %c0_8 = arith.constant 0 : index
    %c0_9 = arith.constant 0 : index
    %19 = vector.load %arg4[%c0_8, %c0_9] : memref<128x384xbf16, #tpu.memory_space<vmem>>, vector<128x384xbf16>
    %cst_10 = arith.constant dense<0.000000e+00> : vector<8x384xf32>
    %20 = tpu.matmul %18, %19, %cst_10 {dimension_numbers = #tpu.dot_dimension_numbers<[1], [0], [0], [1], [0, 0, 1, 1], [], []>} : vector<8x128xbf16>, vector<128x384xbf16>, vector<8x384xf32> -> vector<8x384xf32>
    %c0_11 = arith.constant 0 : index
    %c0_12 = arith.constant 0 : index
    %21 = vector.load %arg5[%c0_11, %c0_12] : memref<1x384xf32, #tpu.memory_space<vmem>>, vector<1x384xf32>
    %22 = vector.broadcast %21 : vector<1x384xf32> to vector<8x384xf32>
    %23 = arith.addf %20, %22 : vector<8x384xf32>
    %24 = vector.extract_strided_slice %23 {offsets = [0, 0], sizes = [8, 128], strides = [1, 1]} : vector<8x384xf32> to vector<8x128xf32>
    %25 = vector.shape_cast %24 : vector<8x128xf32> to vector<1x8x128xf32>
    %26 = vector.extract_strided_slice %23 {offsets = [0, 128], sizes = [8, 128], strides = [1, 1]} : vector<8x384xf32> to vector<8x128xf32>
    %27 = vector.shape_cast %26 : vector<8x128xf32> to vector<1x8x128xf32>
    %28 = vector.extract_strided_slice %23 {offsets = [0, 256], sizes = [8, 128], strides = [1, 1]} : vector<8x384xf32> to vector<8x128xf32>
    %29 = vector.shape_cast %28 : vector<8x128xf32> to vector<1x8x128xf32>
    %30 = vector.shape_cast %25 : vector<1x8x128xf32> to vector<1x8x1x128xf32>
    %31 = vector.shape_cast %27 : vector<1x8x128xf32> to vector<1x1x8x128xf32>
    %32 = vector.broadcast %30 : vector<1x8x1x128xf32> to vector<1x8x8x128xf32>
    %33 = vector.broadcast %31 : vector<1x1x8x128xf32> to vector<1x8x8x128xf32>
    %34 = arith.mulf %32, %33 : vector<1x8x8x128xf32>
    %35 = vector.shape_cast %34 : vector<1x8x8x128xf32> to vector<64x128xf32>
    %36 = arith.truncf %35 : vector<64x128xf32> to vector<64x128xbf16>
    %c0_13 = arith.constant 0 : index
    %c0_14 = arith.constant 0 : index
    %37 = vector.load %arg6[%c0_13, %c0_14] : memref<128x128xbf16, #tpu.memory_space<vmem>>, vector<128x128xbf16>
    %cst_15 = arith.constant dense<0.000000e+00> : vector<64x128xf32>
    %38 = tpu.matmul %36, %37, %cst_15 {dimension_numbers = #tpu.dot_dimension_numbers<[1], [0], [0], [1], [0, 0, 1, 1], [], []>} : vector<64x128xbf16>, vector<128x128xbf16>, vector<64x128xf32> -> vector<64x128xf32>
    %39 = vector.shape_cast %38 : vector<64x128xf32> to vector<1x8x8x128xf32>
    %cst_16 = arith.constant dense<0xFF800000> : vector<1x8x128xf32>
    %40 = vector.multi_reduction <maximumf>, %39, %cst_16 [2] : vector<1x8x8x128xf32> to vector<1x8x128xf32>
    %41 = vector.shape_cast %40 : vector<1x8x128xf32> to vector<1x8x1x128xf32>
    %42 = vector.broadcast %41 : vector<1x8x1x128xf32> to vector<1x8x8x128xf32>
    %43 = arith.subf %39, %42 : vector<1x8x8x128xf32>
    %44 = math.exp %43 : vector<1x8x8x128xf32>
    %cst_17 = arith.constant dense<0.000000e+00> : vector<1x8x128xf32>
    %45 = vector.multi_reduction <add>, %44, %cst_17 [2] : vector<1x8x8x128xf32> to vector<1x8x128xf32>
    %46 = vector.shape_cast %45 : vector<1x8x128xf32> to vector<1x8x1x128xf32>
    %47 = tpu.reciprocal %46 {approx = true} : vector<1x8x1x128xf32> -> vector<1x8x1x128xf32>
    %48 = vector.broadcast %47 : vector<1x8x1x128xf32> to vector<1x8x8x128xf32>
    %49 = arith.mulf %44, %48 : vector<1x8x8x128xf32>
    %50 = vector.shape_cast %29 : vector<1x8x128xf32> to vector<1x1x8x128xf32>
    %51 = vector.broadcast %50 : vector<1x1x8x128xf32> to vector<1x8x8x128xf32>
    %52 = arith.mulf %49, %51 : vector<1x8x8x128xf32>
    %cst_18 = arith.constant dense<0.000000e+00> : vector<1x8x128xf32>
    %53 = vector.multi_reduction <add>, %52, %cst_18 [2] : vector<1x8x8x128xf32> to vector<1x8x128xf32>
    %54 = vector.shape_cast %53 : vector<1x8x128xf32> to vector<8x128xf32>
    %55 = arith.truncf %54 : vector<8x128xf32> to vector<8x128xbf16>
    %c0_19 = arith.constant 0 : index
    %c0_20 = arith.constant 0 : index
    %56 = vector.load %arg7[%c0_19, %c0_20] : memref<128x128xbf16, #tpu.memory_space<vmem>>, vector<128x128xbf16>
    %cst_21 = arith.constant dense<0.000000e+00> : vector<8x128xf32>
    %57 = tpu.matmul %55, %56, %cst_21 {dimension_numbers = #tpu.dot_dimension_numbers<[1], [0], [0], [1], [0, 0, 1, 1], [], []>} : vector<8x128xbf16>, vector<128x128xbf16>, vector<8x128xf32> -> vector<8x128xf32>
    %c0_22 = arith.constant 0 : index
    %c0_23 = arith.constant 0 : index
    %58 = vector.load %arg8[%c0_22, %c0_23] : memref<1x128xf32, #tpu.memory_space<vmem>>, vector<1x128xf32>
    %59 = vector.broadcast %58 : vector<1x128xf32> to vector<8x128xf32>
    %60 = arith.addf %57, %59 : vector<8x128xf32>
    %61 = arith.addf %1, %60 : vector<8x128xf32>
    %62 = vector.extract_strided_slice %2 {offsets = [2, 0], sizes = [1, 128], strides = [1, 1]} : vector<4x128xf32> to vector<1x128xf32>
    %63 = vector.extract_strided_slice %2 {offsets = [3, 0], sizes = [1, 128], strides = [1, 1]} : vector<4x128xf32> to vector<1x128xf32>
    %cst_24 = arith.constant dense<0.000000e+00> : vector<8x128xf32>
    %64 = tpu.matmul %61, %3, %cst_24 {dimension_numbers = #tpu.dot_dimension_numbers<[1], [0], [0], [1], [0, 0, 1, 1], [], []>} : vector<8x128xf32>, vector<128x128xf32>, vector<8x128xf32> -> vector<8x128xf32>
    %65 = arith.subf %61, %64 : vector<8x128xf32>
    %66 = arith.mulf %65, %65 : vector<8x128xf32>
    %cst_25 = arith.constant dense<0.000000e+00> : vector<8x128xf32>
    %67 = tpu.matmul %66, %3, %cst_25 {dimension_numbers = #tpu.dot_dimension_numbers<[1], [0], [0], [1], [0, 0, 1, 1], [], []>} : vector<8x128xf32>, vector<128x128xf32>, vector<8x128xf32> -> vector<8x128xf32>
    %cst_26 = arith.constant 9.99999997E-7 : f32
    %68 = vector.broadcast %cst_26 : f32 to vector<8x128xf32>
    %69 = arith.addf %67, %68 : vector<8x128xf32>
    %70 = math.rsqrt %69 : vector<8x128xf32>
    %71 = arith.mulf %65, %70 : vector<8x128xf32>
    %72 = vector.broadcast %62 : vector<1x128xf32> to vector<8x128xf32>
    %73 = arith.mulf %71, %72 : vector<8x128xf32>
    %74 = vector.broadcast %63 : vector<1x128xf32> to vector<8x128xf32>
    %75 = arith.addf %73, %74 : vector<8x128xf32>
    %76 = arith.truncf %75 : vector<8x128xf32> to vector<8x128xbf16>
    %c0_27 = arith.constant 0 : index
    %c0_28 = arith.constant 0 : index
    %77 = vector.load %arg9[%c0_27, %c0_28] : memref<128x512xbf16, #tpu.memory_space<vmem>>, vector<128x512xbf16>
    %cst_29 = arith.constant dense<0.000000e+00> : vector<8x512xf32>
    %78 = tpu.matmul %76, %77, %cst_29 {dimension_numbers = #tpu.dot_dimension_numbers<[1], [0], [0], [1], [0, 0, 1, 1], [], []>} : vector<8x128xbf16>, vector<128x512xbf16>, vector<8x512xf32> -> vector<8x512xf32>
    %c0_30 = arith.constant 0 : index
    %c0_31 = arith.constant 0 : index
    %79 = vector.load %arg10[%c0_30, %c0_31] : memref<1x512xf32, #tpu.memory_space<vmem>>, vector<1x512xf32>
    %80 = vector.broadcast %79 : vector<1x512xf32> to vector<8x512xf32>
    %81 = arith.addf %78, %80 : vector<8x512xf32>
    %cst_32 = arith.constant 5.000000e-01 : f32
    %82 = vector.broadcast %cst_32 : f32 to vector<8x512xf32>
    %83 = arith.mulf %82, %81 : vector<8x512xf32>
    %cst_33 = arith.constant 0.707106769 : f32
    %84 = vector.broadcast %cst_33 : f32 to vector<8x512xf32>
    %85 = arith.mulf %81, %84 : vector<8x512xf32>
    %86 = math.absf %85 : vector<8x512xf32>
    %cst_34 = arith.constant 0.327591091 : f32
    %87 = vector.broadcast %cst_34 : f32 to vector<8x512xf32>
    %88 = arith.mulf %87, %86 : vector<8x512xf32>
    %cst_35 = arith.constant 1.000000e+00 : f32
    %89 = vector.broadcast %cst_35 : f32 to vector<8x512xf32>
    %90 = arith.addf %89, %88 : vector<8x512xf32>
    %cst_36 = arith.constant 1.000000e+00 : f32
    %91 = vector.broadcast %cst_36 : f32 to vector<8x512xf32>
    %92 = arith.divf %91, %90 : vector<8x512xf32>
    %cst_37 = arith.constant 1.06140542 : f32
    %93 = vector.broadcast %cst_37 : f32 to vector<8x512xf32>
    %94 = arith.mulf %93, %92 : vector<8x512xf32>
    %cst_38 = arith.constant -1.45315206 : f32
    %95 = vector.broadcast %cst_38 : f32 to vector<8x512xf32>
    %96 = arith.addf %94, %95 : vector<8x512xf32>
    %97 = arith.mulf %96, %92 : vector<8x512xf32>
    %cst_39 = arith.constant 1.42141378 : f32
    %98 = vector.broadcast %cst_39 : f32 to vector<8x512xf32>
    %99 = arith.addf %97, %98 : vector<8x512xf32>
    %100 = arith.mulf %99, %92 : vector<8x512xf32>
    %cst_40 = arith.constant -0.284496725 : f32
    %101 = vector.broadcast %cst_40 : f32 to vector<8x512xf32>
    %102 = arith.addf %100, %101 : vector<8x512xf32>
    %103 = arith.mulf %102, %92 : vector<8x512xf32>
    %cst_41 = arith.constant 0.254829586 : f32
    %104 = vector.broadcast %cst_41 : f32 to vector<8x512xf32>
    %105 = arith.addf %103, %104 : vector<8x512xf32>
    %106 = arith.mulf %105, %92 : vector<8x512xf32>
    %cst_42 = arith.constant 0.000000e+00 : f32
    %107 = vector.broadcast %cst_42 : f32 to vector<8x512xf32>
    %108 = arith.subf %107, %86 : vector<8x512xf32>
    %109 = arith.mulf %108, %86 : vector<8x512xf32>
    %110 = math.exp %109 : vector<8x512xf32>
    %111 = arith.mulf %106, %110 : vector<8x512xf32>
    %cst_43 = arith.constant 1.000000e+00 : f32
    %112 = vector.broadcast %cst_43 : f32 to vector<8x512xf32>
    %113 = arith.subf %112, %111 : vector<8x512xf32>
    %cst_44 = arith.constant 0.000000e+00 : f32
    %114 = vector.broadcast %cst_44 : f32 to vector<8x512xf32>
    %115 = arith.cmpf oge, %85, %114 : vector<8x512xf32>
    %cst_45 = arith.constant 0.000000e+00 : f32
    %116 = vector.broadcast %cst_45 : f32 to vector<8x512xf32>
    %117 = arith.subf %116, %113 : vector<8x512xf32>
    %118 = arith.select %115, %113, %117 : vector<8x512xi1>, vector<8x512xf32>
    %cst_46 = arith.constant 1.000000e+00 : f32
    %119 = vector.broadcast %cst_46 : f32 to vector<8x512xf32>
    %120 = arith.addf %119, %118 : vector<8x512xf32>
    %121 = arith.mulf %83, %120 : vector<8x512xf32>
    %122 = arith.truncf %121 : vector<8x512xf32> to vector<8x512xbf16>
    %c0_47 = arith.constant 0 : index
    %c0_48 = arith.constant 0 : index
    %123 = vector.load %arg11[%c0_47, %c0_48] : memref<512x128xbf16, #tpu.memory_space<vmem>>, vector<512x128xbf16>
    %cst_49 = arith.constant dense<0.000000e+00> : vector<8x128xf32>
    %124 = tpu.matmul %122, %123, %cst_49 {dimension_numbers = #tpu.dot_dimension_numbers<[1], [0], [0], [1], [0, 0, 1, 1], [], []>} : vector<8x512xbf16>, vector<512x128xbf16>, vector<8x128xf32> -> vector<8x128xf32>
    %c0_50 = arith.constant 0 : index
    %c0_51 = arith.constant 0 : index
    %125 = vector.load %arg12[%c0_50, %c0_51] : memref<1x128xf32, #tpu.memory_space<vmem>>, vector<1x128xf32>
    %126 = vector.broadcast %125 : vector<1x128xf32> to vector<8x128xf32>
    %127 = arith.addf %124, %126 : vector<8x128xf32>
    %128 = arith.addf %61, %127 : vector<8x128xf32>
    %129 = vector.shape_cast %128 : vector<8x128xf32> to vector<1x8x128xf32>
    %c0_52 = arith.constant 0 : index
    %c0_53 = arith.constant 0 : index
    %c0_54 = arith.constant 0 : index
    %130 = vector.load %arg13[%c0_52, %c0_53, %c0_54] : memref<1x8x128xf32, #tpu.memory_space<vmem>>, vector<1x8x128xf32>
    tpu.vector_store %arg13[%c0_52, %c0_53, %c0_54], %129 {strides = array<i32>} : memref<1x8x128xf32, #tpu.memory_space<vmem>>, vector<1x8x128xf32>,
    return
  }
  func.func @transform_0(%arg0: i32) -> (i32, i32, i32) {
    %c0_i32 = arith.constant 0 : i32
    %c0_i32_0 = arith.constant 0 : i32
    %c0_i32_1 = arith.constant 0 : i32
    return %arg0, %c0_i32, %c0_i32_0 : i32, i32, i32
  }
  func.func @transform_1(%arg0: i32) -> (i32, i32) {
    %c0_i32 = arith.constant 0 : i32
    %c0_i32_0 = arith.constant 0 : i32
    %c0_i32_1 = arith.constant 0 : i32
    return %c0_i32, %c0_i32_0 : i32, i32
  }
  func.func @transform_2(%arg0: i32) -> (i32, i32) {
    %c0_i32 = arith.constant 0 : i32
    %c0_i32_0 = arith.constant 0 : i32
    %c0_i32_1 = arith.constant 0 : i32
    return %c0_i32, %c0_i32_0 : i32, i32
  }
  func.func @transform_3(%arg0: i32) -> (i32, i32) {
    %c0_i32 = arith.constant 0 : i32
    %c0_i32_0 = arith.constant 0 : i32
    %c0_i32_1 = arith.constant 0 : i32
    return %c0_i32, %c0_i32_0 : i32, i32
  }
  func.func @transform_4(%arg0: i32) -> (i32, i32) {
    %c0_i32 = arith.constant 0 : i32
    %c0_i32_0 = arith.constant 0 : i32
    %c0_i32_1 = arith.constant 0 : i32
    return %c0_i32, %c0_i32_0 : i32, i32
  }
  func.func @transform_5(%arg0: i32) -> (i32, i32) {
    %c0_i32 = arith.constant 0 : i32
    %c0_i32_0 = arith.constant 0 : i32
    %c0_i32_1 = arith.constant 0 : i32
    return %c0_i32, %c0_i32_0 : i32, i32
  }
  func.func @transform_6(%arg0: i32) -> (i32, i32) {
    %c0_i32 = arith.constant 0 : i32
    %c0_i32_0 = arith.constant 0 : i32
    %c0_i32_1 = arith.constant 0 : i32
    return %c0_i32, %c0_i32_0 : i32, i32
  }
  func.func @transform_7(%arg0: i32) -> (i32, i32) {
    %c0_i32 = arith.constant 0 : i32
    %c0_i32_0 = arith.constant 0 : i32
    %c0_i32_1 = arith.constant 0 : i32
    return %c0_i32, %c0_i32_0 : i32, i32
  }
  func.func @transform_8(%arg0: i32) -> (i32, i32) {
    %c0_i32 = arith.constant 0 : i32
    %c0_i32_0 = arith.constant 0 : i32
    %c0_i32_1 = arith.constant 0 : i32
    return %c0_i32, %c0_i32_0 : i32, i32
  }
  func.func @transform_9(%arg0: i32) -> (i32, i32) {
    %c0_i32 = arith.constant 0 : i32
    %c0_i32_0 = arith.constant 0 : i32
    %c0_i32_1 = arith.constant 0 : i32
    return %c0_i32, %c0_i32_0 : i32, i32
  }
  func.func @transform_10(%arg0: i32) -> (i32, i32) {
    %c0_i32 = arith.constant 0 : i32
    %c0_i32_0 = arith.constant 0 : i32
    %c0_i32_1 = arith.constant 0 : i32
    return %c0_i32, %c0_i32_0 : i32, i32
  }
  func.func @transform_11(%arg0: i32) -> (i32, i32) {
    %c0_i32 = arith.constant 0 : i32
    %c0_i32_0 = arith.constant 0 : i32
    %c0_i32_1 = arith.constant 0 : i32
    return %c0_i32, %c0_i32_0 : i32, i32
  }
  func.func @transform_12(%arg0: i32) -> (i32, i32, i32) {
    %c0_i32 = arith.constant 0 : i32
    %c0_i32_0 = arith.constant 0 : i32
    %c0_i32_1 = arith.constant 0 : i32
    return %arg0, %c0_i32, %c0_i32_0 : i32, i32, i32
  }
}

</mosaic_0001>

<llo_original>
// kernel: tpu_custom_call.1
$region0: #{tpu_custom_call.1}
  #allocation0 [shape = 'u32[]', space=smem, size = 0x4, offset = 0x4, fixed_abs, tag = 'smem constant byte address 0x4 - core index']
  #allocation1 [shape = 'u32[144,128]{1,0:T(1,128)}', space=vmem, size = 0x12000, scoped, tag = 'internal scratch']
  %s0 = inlined_call_operand.hbm [shape: f32[2,8,128], index: 0, kind: input, shape index: {}]
  %s1 = inlined_call_operand.hbm [shape: f32[4,128], index: 1, kind: input, shape index: {}]
  %s2 = inlined_call_operand.hbm [shape: f32[128,128], index: 2, kind: input, shape index: {}]
  %s3 = inlined_call_operand.hbm [shape: bf16[128,384], index: 3, kind: input, shape index: {}]
  %s4 = inlined_call_operand.vmem [shape: f32[1,384], index: 4, kind: input, shape index: {}]
  %s5 = inlined_call_operand.hbm [shape: bf16[128,128], index: 5, kind: input, shape index: {}]
  %s6 = inlined_call_operand.hbm [shape: bf16[128,128], index: 6, kind: input, shape index: {}]
  %s7 = inlined_call_operand.vmem [shape: f32[1,128], index: 7, kind: input, shape index: {}]
  %s8 = inlined_call_operand.hbm [shape: bf16[128,512], index: 8, kind: input, shape index: {}]
  %s9 = inlined_call_operand.vmem [shape: f32[1,512], index: 9, kind: input, shape index: {}]
  %s10 = inlined_call_operand.hbm [shape: bf16[512,128], index: 10, kind: input, shape index: {}]
  %s11 = inlined_call_operand.vmem [shape: f32[1,128], index: 11, kind: input, shape index: {}]
  %s12 = inlined_call_operand.hbm [shape: f32[2,8,128], index: 12, kind: output, shape index: {}]
  %s13 = sld [smem:[#allocation0]]
  $region113: #{tpu_custom_call.1} parent=0
    _
  %s15 = ssub.s32 1, %s13
  %s16 = scalar_select 0, %s15, %s13
  $region1: #{tpu_custom_call.1} parent=0
    #allocation2 [shape = 'u8[8192]{0}', space=vmem, size = 0x2000, scoped, tag = 'input window, operand 0']
    #allocation3 [shape = 's32[2]{0}', space=sflag, size = 0x8, scoped, tag = 'scoped memory for tpu_custom_call.1']
    #allocation4 [shape = 's32[2]{0}', space=sflag, size = 0x8, scoped, tag = 'scoped memory for tpu_custom_call.1']
    #allocation5 [shape = 'u8[2048]{0}', space=vmem, size = 0x800, scoped, tag = 'input window, operand 1, single buffered']
    #allocation6 [shape = 's32[1]{0}', space=sflag, size = 0x4, scoped, tag = 'scoped memory for tpu_custom_call.1']
    #allocation7 [shape = 'u8[65536]{0}', space=vmem, size = 0x10000, scoped, tag = 'input window, operand 2, single buffered']
    #allocation8 [shape = 'u8[98304]{0}', space=vmem, size = 0x18000, scoped, tag = 'input window, operand 3, single buffered']
    #allocation9 [shape = 's32[1]{0}', space=sflag, size = 0x4, scoped, tag = 'scoped memory for tpu_custom_call.1']
    #allocation10 [shape = 'u8[32768]{0}', space=vmem, size = 0x8000, scoped, tag = 'input window, operand 5, single buffered']
    #allocation11 [shape = 'u8[32768]{0}', space=vmem, size = 0x8000, scoped, tag = 'input window, operand 6, single buffered']
    #allocation12 [shape = 's32[1]{0}', space=sflag, size = 0x4, scoped, tag = 'scoped memory for tpu_custom_call.1']
    #allocation13 [shape = 'u8[131072]{0}', space=vmem, size = 0x20000, scoped, tag = 'input window, operand 8, single buffered']
    #allocation14 [shape = 'u8[131072]{0}', space=vmem, size = 0x20000, scoped, tag = 'input window, operand 10, single buffered']
    #allocation15 [shape = 's32[1]{0}', space=sflag, size = 0x4, scoped, tag = 'scoped memory for tpu_custom_call.1']
    #allocation16 [shape = 'u8[8192]{0}', space=vmem, size = 0x2000, scoped, tag = 'output window, operand 0']
    %17 = vsyncpa [#allocation3], 0
    %s18 = scalar_lea.sflag [#allocation3], 1
    %19 = vsyncpa %s18, 0
    %20 = vsyncpa [#allocation6], 0
    %21 = vsyncpa [#allocation9], 0
    %22 = vsyncpa [#allocation12], 0
    %23 = vsyncpa [#allocation15], 0
    %24 = vsyncpa [#allocation4], 0
    %s25 = scalar_lea.sflag [#allocation4], 1
    %26 = vsyncpa %s25, 0
    loop: start=0, step=1, limit=4
    $region2: #{tpu_custom_call.1} parent=1 // loop_pre_header
      _
    $region3: #{tpu_custom_call.1} parent=1 // loop_header
      %s28 = sphi 0, %s32
      %p29 = scmp.ge.s32.totalorder %s28, 4
      %s38 = sphi 0, %s40
      %s41 = sphi 0, %s38
      %s42 = sphi 0, %s41
      %s58 = sphi 0, %s42
      %s62 = sphi 0, %s62
      %s64 = sphi 0, %s62
      %s65 = sphi 0, %s64
      %s79 = sphi 0, %s65
      %s83 = sphi 0, %s83
      %s85 = sphi 0, %s83
      %s86 = sphi 0, %s85
      %s100 = sphi 0, %s86
      %s104 = sphi 0, %s104
      %s106 = sphi 0, %s104
      %s107 = sphi 0, %s106
      %s121 = sphi 0, %s107
      %s125 = sphi 0, %s125
      %s127 = sphi 0, %s125
      %s128 = sphi 0, %s127
      %s142 = sphi 0, %s128
      %s146 = sphi 0, %s146
      %s148 = sphi 0, %s146
      %s149 = sphi 0, %s148
      %s163 = sphi 0, %s149
      %s167 = sphi 0, %s167
      %s169 = sphi 0, %s167
      %s170 = sphi 0, %s169
      %s184 = sphi 0, %s170
      %s188 = sphi 0, %s188
      %s190 = sphi 0, %s188
      %s191 = sphi 0, %s190
      %s205 = sphi 0, %s191
      %s209 = sphi 0, %s209
      %s211 = sphi 0, %s209
      %s212 = sphi 0, %s211
      %s226 = sphi 0, %s212
      %s230 = sphi 0, %s230
      %s232 = sphi 0, %s230
      %s233 = sphi 0, %s232
      %s247 = sphi 0, %s233
      %s251 = sphi 0, %s251
      %s253 = sphi 0, %s251
      %s254 = sphi 0, %s253
      %s268 = sphi 0, %s254
      %s272 = sphi 0, %s272
      %s274 = sphi 0, %s272
      %s275 = sphi 0, %s274
      %s289 = sphi 0, %s275
      %s295 = sphi 0, %s297
      %s298 = sphi 0, %s295
      %s299 = sphi 0, %s298
      %s315 = sphi 0, %s299
    $region4: #{tpu_custom_call.1} parent=1 // loop_header_branch
      %31 = sbr.rel (%p29) target = $region8
    $region5: #{tpu_custom_call.1} parent=1 // loop_body
      %s33 = ssub.s32 %s28, 1
      %s34 = ssub.s32 %s28, 2
      %s35 = sadd.s32 %s28, 1
      %s36 = ssub.s32 %s28, %s35
      %p37 = scmp.eq.s32.totalorder %s36, 0
      %s39 = sadd.s32 %s38, 1
      %s40 = scalar_select %p37, %s38, %s39
      %p43 = pneg %p37
      %p44 = scmp.eq.s32.totalorder %s28, 1
      %p45 = por %p43, %p44
      %p46 = scmp.ne.s32.totalorder %s38, %s41
      %p47 = scmp.eq.s32.totalorder %s28, 0
      %p48 = por %p46, %p47
      %p49 = scmp.ne.s32.totalorder %s38, %s41
      %p50 = scmp.eq.s32.totalorder %s33, 1
      %p51 = por %p49, %p50
      %p52 = scmp.ne.s32.totalorder %s41, %s42
      %p53 = scmp.eq.s32.totalorder %s33, 0
      %p54 = por %p52, %p53
      %p55 = scmp.ne.s32.totalorder %s41, %s42
      %p56 = scmp.eq.s32.totalorder %s34, 1
      %p57 = por %p55, %p56
      %p59 = scmp.ne.s32.totalorder %s42, %s58
      %p60 = scmp.eq.s32.totalorder %s34, 0
      %p61 = por %p59, %p60
      %s63 = sadd.s32 %s62, 1
      %p66 = scmp.eq.s32.totalorder %s28, 1
      %p67 = scmp.ne.s32.totalorder %s62, %s64
      %p68 = scmp.eq.s32.totalorder %s28, 0
      %p69 = por %p67, %p68
      %p70 = scmp.ne.s32.totalorder %s62, %s64
      %p71 = scmp.eq.s32.totalorder %s33, 1
      %p72 = por %p70, %p71
      %p73 = scmp.ne.s32.totalorder %s64, %s65
      %p74 = scmp.eq.s32.totalorder %s33, 0
      %p75 = por %p73, %p74
      %p76 = scmp.ne.s32.totalorder %s64, %s65
      %p77 = scmp.eq.s32.totalorder %s34, 1
      %p78 = por %p76, %p77
      %p80 = scmp.ne.s32.totalorder %s65, %s79
      %p81 = scmp.eq.s32.totalorder %s34, 0
      %p82 = por %p80, %p81
      %s84 = sadd.s32 %s83, 1
      %p87 = scmp.eq.s32.totalorder %s28, 1
      %p88 = scmp.ne.s32.totalorder %s83, %s85
      %p89 = scmp.eq.s32.totalorder %s28, 0
      %p90 = por %p88, %p89
      %p91 = scmp.ne.s32.totalorder %s83, %s85
      %p92 = scmp.eq.s32.totalorder %s33, 1
      %p93 = por %p91, %p92
      %p94 = scmp.ne.s32.totalorder %s85, %s86
      %p95 = scmp.eq.s32.totalorder %s33, 0
      %p96 = por %p94, %p95
      %p97 = scmp.ne.s32.totalorder %s85, %s86
      %p98 = scmp.eq.s32.totalorder %s34, 1
      %p99 = por %p97, %p98
      %p101 = scmp.ne.s32.totalorder %s86, %s100
      %p102 = scmp.eq.s32.totalorder %s34, 0
      %p103 = por %p101, %p102
      %s105 = sadd.s32 %s104, 1
      %p108 = scmp.eq.s32.totalorder %s28, 1
      %p109 = scmp.ne.s32.totalorder %s104, %s106
      %p110 = scmp.eq.s32.totalorder %s28, 0
      %p111 = por %p109, %p110
      %p112 = scmp.ne.s32.totalorder %s104, %s106
      %p113 = scmp.eq.s32.totalorder %s33, 1
      %p114 = por %p112, %p113
      %p115 = scmp.ne.s32.totalorder %s106, %s107
      %p116 = scmp.eq.s32.totalorder %s33, 0
      %p117 = por %p115, %p116
      %p118 = scmp.ne.s32.totalorder %s106, %s107
      %p119 = scmp.eq.s32.totalorder %s34, 1
      %p120 = por %p118, %p119
      %p122 = scmp.ne.s32.totalorder %s107, %s121
      %p123 = scmp.eq.s32.totalorder %s34, 0
      %p124 = por %p122, %p123
      %s126 = sadd.s32 %s125, 1
      %p129 = scmp.eq.s32.totalorder %s28, 1
      %p130 = scmp.ne.s32.totalorder %s125, %s127
      %p131 = scmp.eq.s32.totalorder %s28, 0
      %p132 = por %p130, %p131
      %p133 = scmp.ne.s32.totalorder %s125, %s127
      %p134 = scmp.eq.s32.totalorder %s33, 1
      %p135 = por %p133, %p134
      %p136 = scmp.ne.s32.totalorder %s127, %s128
      %p137 = scmp.eq.s32.totalorder %s33, 0
      %p138 = por %p136, %p137
      %p139 = scmp.ne.s32.totalorder %s127, %s128
      %p140 = scmp.eq.s32.totalorder %s34, 1
      %p141 = por %p139, %p140
      %p143 = scmp.ne.s32.totalorder %s128, %s142
      %p144 = scmp.eq.s32.totalorder %s34, 0
      %p145 = por %p143, %p144
      %s147 = sadd.s32 %s146, 1
      %p150 = scmp.eq.s32.totalorder %s28, 1
      %p151 = scmp.ne.s32.totalorder %s146, %s148
      %p152 = scmp.eq.s32.totalorder %s28, 0
      %p153 = por %p151, %p152
      %p154 = scmp.ne.s32.totalorder %s146, %s148
      %p155 = scmp.eq.s32.totalorder %s33, 1
      %p156 = por %p154, %p155
      %p157 = scmp.ne.s32.totalorder %s148, %s149
      %p158 = scmp.eq.s32.totalorder %s33, 0
      %p159 = por %p157, %p158
      %p160 = scmp.ne.s32.totalorder %s148, %s149
      %p161 = scmp.eq.s32.totalorder %s34, 1
      %p162 = por %p160, %p161
      %p164 = scmp.ne.s32.totalorder %s149, %s163
      %p165 = scmp.eq.s32.totalorder %s34, 0
      %p166 = por %p164, %p165
      %s168 = sadd.s32 %s167, 1
      %p171 = scmp.eq.s32.totalorder %s28, 1
      %p172 = scmp.ne.s32.totalorder %s167, %s169
      %p173 = scmp.eq.s32.totalorder %s28, 0
      %p174 = por %p172, %p173
      %p175 = scmp.ne.s32.totalorder %s167, %s169
      %p176 = scmp.eq.s32.totalorder %s33, 1
      %p177 = por %p175, %p176
      %p178 = scmp.ne.s32.totalorder %s169, %s170
      %p179 = scmp.eq.s32.totalorder %s33, 0
      %p180 = por %p178, %p179
      %p181 = scmp.ne.s32.totalorder %s169, %s170
      %p182 = scmp.eq.s32.totalorder %s34, 1
      %p183 = por %p181, %p182
      %p185 = scmp.ne.s32.totalorder %s170, %s184
      %p186 = scmp.eq.s32.totalorder %s34, 0
      %p187 = por %p185, %p186
      %s189 = sadd.s32 %s188, 1
      %p192 = scmp.eq.s32.totalorder %s28, 1
      %p193 = scmp.ne.s32.totalorder %s188, %s190
      %p194 = scmp.eq.s32.totalorder %s28, 0
      %p195 = por %p193, %p194
      %p196 = scmp.ne.s32.totalorder %s188, %s190
      %p197 = scmp.eq.s32.totalorder %s33, 1
      %p198 = por %p196, %p197
      %p199 = scmp.ne.s32.totalorder %s190, %s191
      %p200 = scmp.eq.s32.totalorder %s33, 0
      %p201 = por %p199, %p200
      %p202 = scmp.ne.s32.totalorder %s190, %s191
      %p203 = scmp.eq.s32.totalorder %s34, 1
      %p204 = por %p202, %p203
      %p206 = scmp.ne.s32.totalorder %s191, %s205
      %p207 = scmp.eq.s32.totalorder %s34, 0
      %p208 = por %p206, %p207
      %s210 = sadd.s32 %s209, 1
      %p213 = scmp.eq.s32.totalorder %s28, 1
      %p214 = scmp.ne.s32.totalorder %s209, %s211
      %p215 = scmp.eq.s32.totalorder %s28, 0
      %p216 = por %p214, %p215
      %p217 = scmp.ne.s32.totalorder %s209, %s211
      %p218 = scmp.eq.s32.totalorder %s33, 1
      %p219 = por %p217, %p218
      %p220 = scmp.ne.s32.totalorder %s211, %s212
      %p221 = scmp.eq.s32.totalorder %s33, 0
      %p222 = por %p220, %p221
      %p223 = scmp.ne.s32.totalorder %s211, %s212
      %p224 = scmp.eq.s32.totalorder %s34, 1
      %p225 = por %p223, %p224
      %p227 = scmp.ne.s32.totalorder %s212, %s226
      %p228 = scmp.eq.s32.totalorder %s34, 0
      %p229 = por %p227, %p228
      %s231 = sadd.s32 %s230, 1
      %p234 = scmp.eq.s32.totalorder %s28, 1
      %p235 = scmp.ne.s32.totalorder %s230, %s232
      %p236 = scmp.eq.s32.totalorder %s28, 0
      %p237 = por %p235, %p236
      %p238 = scmp.ne.s32.totalorder %s230, %s232
      %p239 = scmp.eq.s32.totalorder %s33, 1
      %p240 = por %p238, %p239
      %p241 = scmp.ne.s32.totalorder %s232, %s233
      %p242 = scmp.eq.s32.totalorder %s33, 0
      %p243 = por %p241, %p242
      %p244 = scmp.ne.s32.totalorder %s232, %s233
      %p245 = scmp.eq.s32.totalorder %s34, 1
      %p246 = por %p244, %p245
      %p248 = scmp.ne.s32.totalorder %s233, %s247
      %p249 = scmp.eq.s32.totalorder %s34, 0
      %p250 = por %p248, %p249
      %s252 = sadd.s32 %s251, 1
      %p255 = scmp.eq.s32.totalorder %s28, 1
      %p256 = scmp.ne.s32.totalorder %s251, %s253
      %p257 = scmp.eq.s32.totalorder %s28, 0
      %p258 = por %p256, %p257
      %p259 = scmp.ne.s32.totalorder %s251, %s253
      %p260 = scmp.eq.s32.totalorder %s33, 1
      %p261 = por %p259, %p260
      %p262 = scmp.ne.s32.totalorder %s253, %s254
      %p263 = scmp.eq.s32.totalorder %s33, 0
      %p264 = por %p262, %p263
      %p265 = scmp.ne.s32.totalorder %s253, %s254
      %p266 = scmp.eq.s32.totalorder %s34, 1
      %p267 = por %p265, %p266
      %p269 = scmp.ne.s32.totalorder %s254, %s268
      %p270 = scmp.eq.s32.totalorder %s34, 0
      %p271 = por %p269, %p270
      %s273 = sadd.s32 %s272, 1
      %p276 = scmp.eq.s32.totalorder %s28, 1
      %p277 = scmp.ne.s32.totalorder %s272, %s274
      %p278 = scmp.eq.s32.totalorder %s28, 0
      %p279 = por %p277, %p278
      %p280 = scmp.ne.s32.totalorder %s272, %s274
      %p281 = scmp.eq.s32.totalorder %s33, 1
      %p282 = por %p280, %p281
      %p283 = scmp.ne.s32.totalorder %s274, %s275
      %p284 = scmp.eq.s32.totalorder %s33, 0
      %p285 = por %p283, %p284
      %p286 = scmp.ne.s32.totalorder %s274, %s275
      %p287 = scmp.eq.s32.totalorder %s34, 1
      %p288 = por %p286, %p287
      %p290 = scmp.ne.s32.totalorder %s275, %s289
      %p291 = scmp.eq.s32.totalorder %s34, 0
      %p292 = por %p290, %p291
      %s293 = ssub.s32 %s28, %s35
      %p294 = scmp.eq.s32.totalorder %s293, 0
      %s296 = sadd.s32 %s295, 1
      %s297 = scalar_select %p294, %s295, %s296
      %p300 = pneg %p294
      %p301 = scmp.eq.s32.totalorder %s28, 1
      %p302 = por %p300, %p301
      %p303 = scmp.ne.s32.totalorder %s295, %s298
      %p304 = scmp.eq.s32.totalorder %s28, 0
      %p305 = por %p303, %p304
      %p306 = scmp.ne.s32.totalorder %s295, %s298
      %p307 = scmp.eq.s32.totalorder %s33, 1
      %p308 = por %p306, %p307
      %p309 = scmp.ne.s32.totalorder %s298, %s299
      %p310 = scmp.eq.s32.totalorder %s33, 0
      %p311 = por %p309, %p310
      %p312 = scmp.ne.s32.totalorder %s298, %s299
      %p313 = scmp.eq.s32.totalorder %s34, 1
      %p314 = por %p312, %p313
      %p316 = scmp.ne.s32.totalorder %s299, %s315
      %p317 = scmp.eq.s32.totalorder %s34, 0
      %p318 = por %p316, %p317
      %p319 = scmp.le.s32.totalorder 1, %s28
      %p320 = scmp.lt.s32.totalorder %s28, 3
      %p321 = pnand %p319, %p320
      %p322 = pneg %p321
      // Predicated region
      $region9: #{tpu_custom_call.1} parent=5 // pred_check
        _
      $region10: #{tpu_custom_call.1} parent=5 // pred_check_branch
        %324 = sbr.rel (%p321) target = $region12
      $region11: #{tpu_custom_call.1} parent=5 // pred_region
        %s325 = ssub.s32 %s28, 1
        // Predicated region
        $region13: #{tpu_custom_call.1} parent=11 // pred_check
          %p326 = pneg %p75
        $region14: #{tpu_custom_call.1} parent=11 // pred_check_branch
          %328 = sbr.rel (%p326) target = $region16
        $region15: #{tpu_custom_call.1} parent=11 // pred_region
          %s330 = ssub.s32 64, 64
          %331 = vsyncadd [#allocation6], %s330
          %s333 = sshll.u32 [#allocation5], 4
          %s334 = int_to_ptr.vmem [resolvable:$true] %s333
          %336 = dma.hbm_to_vmem [thread:$0]  %s1, 64, %s334, [#allocation6]
        $region16: #{tpu_custom_call.1} parent=11 // pred_fallthru
          _
        // Predicated region
        $region17: #{tpu_custom_call.1} parent=11 // pred_check
          %p337 = pneg %p96
        $region18: #{tpu_custom_call.1} parent=11 // pred_check_branch
          %339 = sbr.rel (%p337) target = $region20
        $region19: #{tpu_custom_call.1} parent=11 // pred_region
          %s341 = ssub.s32 2048, 2048
          %342 = vsyncadd [#allocation6], %s341
          %s343 = sshll.u32 [#allocation7], 4
          %s344 = int_to_ptr.vmem [resolvable:$true] %s343
          %349 = dma.hbm_to_vmem [thread:$0]  %s2, 2048, %s344, [#allocation6], 128, 128, 8
        $region20: #{tpu_custom_call.1} parent=11 // pred_fallthru
          _
        // Predicated region
        $region21: #{tpu_custom_call.1} parent=11 // pred_check
          %p350 = pneg %p117
        $region22: #{tpu_custom_call.1} parent=11 // pred_check_branch
          %352 = sbr.rel (%p350) target = $region24
        $region23: #{tpu_custom_call.1} parent=11 // pred_region
          %s354 = ssub.s32 3072, 3072
          %355 = vsyncadd [#allocation9], %s354
          %s356 = sshll.u32 [#allocation8], 4
          %s357 = int_to_ptr.vmem [resolvable:$true] %s356
          %362 = dma.hbm_to_vmem [thread:$0]  %s3, 3072, %s357, [#allocation9], 192, 192, 12
        $region24: #{tpu_custom_call.1} parent=11 // pred_fallthru
          _
        // Predicated region
        $region25: #{tpu_custom_call.1} parent=11 // pred_check
          %p363 = pneg %p138
        $region26: #{tpu_custom_call.1} parent=11 // pred_check_branch
          %365 = sbr.rel (%p363) target = $region28
        $region27: #{tpu_custom_call.1} parent=11 // pred_region
          _
        $region28: #{tpu_custom_call.1} parent=11 // pred_fallthru
          _
        // Predicated region
        $region29: #{tpu_custom_call.1} parent=11 // pred_check
          %p366 = pneg %p159
        $region30: #{tpu_custom_call.1} parent=11 // pred_check_branch
          %368 = sbr.rel (%p366) target = $region32
        $region31: #{tpu_custom_call.1} parent=11 // pred_region
          %s370 = ssub.s32 1024, 1024
          %371 = vsyncadd [#allocation9], %s370
          %s372 = sshll.u32 [#allocation10], 4
          %s373 = int_to_ptr.vmem [resolvable:$true] %s372
          %378 = dma.hbm_to_vmem [thread:$0]  %s5, 1024, %s373, [#allocation9], 64, 64, 4
        $region32: #{tpu_custom_call.1} parent=11 // pred_fallthru
          _
        // Predicated region
        $region33: #{tpu_custom_call.1} parent=11 // pred_check
          %p379 = pneg %p180
        $region34: #{tpu_custom_call.1} parent=11 // pred_check_branch
          %381 = sbr.rel (%p379) target = $region36
        $region35: #{tpu_custom_call.1} parent=11 // pred_region
          %s383 = ssub.s32 1024, 1024
          %384 = vsyncadd [#allocation12], %s383
          %s385 = sshll.u32 [#allocation11], 4
          %s386 = int_to_ptr.vmem [resolvable:$true] %s385
          %391 = dma.hbm_to_vmem [thread:$0]  %s6, 1024, %s386, [#allocation12], 64, 64, 4
        $region36: #{tpu_custom_call.1} parent=11 // pred_fallthru
          _
        // Predicated region
        $region37: #{tpu_custom_call.1} parent=11 // pred_check
          %p392 = pneg %p201
        $region38: #{tpu_custom_call.1} parent=11 // pred_check_branch
          %394 = sbr.rel (%p392) target = $region40
        $region39: #{tpu_custom_call.1} parent=11 // pred_region
          _
        $region40: #{tpu_custom_call.1} parent=11 // pred_fallthru
          _
        // Predicated region
        $region41: #{tpu_custom_call.1} parent=11 // pred_check
          %p395 = pneg %p222
        $region42: #{tpu_custom_call.1} parent=11 // pred_check_branch
          %397 = sbr.rel (%p395) target = $region44
        $region43: #{tpu_custom_call.1} parent=11 // pred_region
          %s399 = ssub.s32 4096, 4096
          %400 = vsyncadd [#allocation12], %s399
          %s401 = sshll.u32 [#allocation13], 4
          %s402 = int_to_ptr.vmem [resolvable:$true] %s401
          %407 = dma.hbm_to_vmem [thread:$0]  %s8, 4096, %s402, [#allocation12], 256, 256, 16
        $region44: #{tpu_custom_call.1} parent=11 // pred_fallthru
          _
        // Predicated region
        $region45: #{tpu_custom_call.1} parent=11 // pred_check
          %p408 = pneg %p243
        $region46: #{tpu_custom_call.1} parent=11 // pred_check_branch
          %410 = sbr.rel (%p408) target = $region48
        $region47: #{tpu_custom_call.1} parent=11 // pred_region
          _
        $region48: #{tpu_custom_call.1} parent=11 // pred_fallthru
          _
        // Predicated region
        $region49: #{tpu_custom_call.1} parent=11 // pred_check
          %p411 = pneg %p264
        $region50: #{tpu_custom_call.1} parent=11 // pred_check_branch
          %413 = sbr.rel (%p411) target = $region52
        $region51: #{tpu_custom_call.1} parent=11 // pred_region
          %s415 = ssub.s32 4096, 4096
          %416 = vsyncadd [#allocation15], %s415
          %s417 = sshll.u32 [#allocation14], 4
          %s418 = int_to_ptr.vmem [resolvable:$true] %s417
          %423 = dma.hbm_to_vmem [thread:$0]  %s10, 4096, %s418, [#allocation15], 64, 64, 4
        $region52: #{tpu_custom_call.1} parent=11 // pred_fallthru
          _
        // Predicated region
        $region53: #{tpu_custom_call.1} parent=11 // pred_check
          %p424 = pneg %p285
        $region54: #{tpu_custom_call.1} parent=11 // pred_check_branch
          %426 = sbr.rel (%p424) target = $region56
        $region55: #{tpu_custom_call.1} parent=11 // pred_region
          _
        $region56: #{tpu_custom_call.1} parent=11 // pred_fallthru
          _
      $region12: #{tpu_custom_call.1} parent=5 // pred_fallthru
        _
      %p427 = scmp.lt.s32.totalorder %s28, 2
      // Predicated region
      $region57: #{tpu_custom_call.1} parent=5 // pred_check
        %p428 = pneg %p427
      $region58: #{tpu_custom_call.1} parent=5 // pred_check_branch
        %430 = sbr.rel (%p428) target = $region60
      $region59: #{tpu_custom_call.1} parent=5 // pred_region
        // Predicated region
        $region61: #{tpu_custom_call.1} parent=59 // pred_check
          %p431 = pneg %p48
        $region62: #{tpu_custom_call.1} parent=59 // pred_check_branch
          %433 = sbr.rel (%p431) target = $region64
        $region63: #{tpu_custom_call.1} parent=59 // pred_region
          %s434 = sand.u32 %s38, 1
          %s435 = scalar_lea.sflag [#allocation3], %s434
          %s436 = sand.u32 %s38, 1
          %s437 = smul.addr %s436, 8
          %s438 = scalar_lea.vmem [#allocation2], %s437
          %s440 = ssub.s32 128, 128
          %441 = vsyncadd %s435, %s440
          %s442 = smul.addr %s28, 128
          %s443 = scalar_lea.hbm %s0, %s442
          %s445 = sshll.u32 %s438, 4
          %s446 = int_to_ptr.vmem [resolvable:$true] %s445
          %448 = dma.hbm_to_vmem [thread:$0]  %s443, 128, %s446, %s435
        $region64: #{tpu_custom_call.1} parent=59 // pred_fallthru
          _
      $region60: #{tpu_custom_call.1} parent=5 // pred_fallthru
        _
      %p449 = scmp.le.s32.totalorder 1, %s28
      %p450 = scmp.lt.s32.totalorder %s28, 3
      %p451 = pnand %p449, %p450
      %p452 = pneg %p451
      // Predicated region
      $region65: #{tpu_custom_call.1} parent=5 // pred_check
        _
      $region66: #{tpu_custom_call.1} parent=5 // pred_check_branch
        %454 = sbr.rel (%p451) target = $region68
      $region67: #{tpu_custom_call.1} parent=5 // pred_region
        %s455 = ssub.s32 %s28, 1
        %s456 = sand.u32 %s41, 1
        %s457 = scalar_lea.sflag [#allocation3], %s456
        %s458 = sand.u32 %s41, 1
        %s459 = smul.addr %s458, 8
        %s460 = scalar_lea.vmem [#allocation2], %s459
        // Predicated region
        $region69: #{tpu_custom_call.1} parent=67 // pred_check
          %p461 = pneg %p54
        $region70: #{tpu_custom_call.1} parent=67 // pred_check_branch
          %463 = sbr.rel (%p461) target = $region72
        $region71: #{tpu_custom_call.1} parent=67 // pred_region
          %464 = dma.done %s457, 128
        $region72: #{tpu_custom_call.1} parent=67 // pred_fallthru
          _
        // Predicated region
        $region73: #{tpu_custom_call.1} parent=67 // pred_check
          %p465 = pneg %p75
        $region74: #{tpu_custom_call.1} parent=67 // pred_check_branch
          %467 = sbr.rel (%p465) target = $region76
        $region75: #{tpu_custom_call.1} parent=67 // pred_region
          %468 = dma.done [#allocation6], 64
        $region76: #{tpu_custom_call.1} parent=67 // pred_fallthru
          _
        // Predicated region
        $region77: #{tpu_custom_call.1} parent=67 // pred_check
          %p469 = pneg %p96
        $region78: #{tpu_custom_call.1} parent=67 // pred_check_branch
          %471 = sbr.rel (%p469) target = $region80
        $region79: #{tpu_custom_call.1} parent=67 // pred_region
          %472 = dma.done [#allocation6], 2048
        $region80: #{tpu_custom_call.1} parent=67 // pred_fallthru
          _
        // Predicated region
        $region81: #{tpu_custom_call.1} parent=67 // pred_check
          %p473 = pneg %p117
        $region82: #{tpu_custom_call.1} parent=67 // pred_check_branch
          %475 = sbr.rel (%p473) target = $region84
        $region83: #{tpu_custom_call.1} parent=67 // pred_region
          %476 = dma.done [#allocation9], 3072
        $region84: #{tpu_custom_call.1} parent=67 // pred_fallthru
          _
        // Predicated region
        $region85: #{tpu_custom_call.1} parent=67 // pred_check
          %p477 = pneg %p159
        $region86: #{tpu_custom_call.1} parent=67 // pred_check_branch
          %479 = sbr.rel (%p477) target = $region88
        $region87: #{tpu_custom_call.1} parent=67 // pred_region
          %480 = dma.done [#allocation9], 1024
        $region88: #{tpu_custom_call.1} parent=67 // pred_fallthru
          _
        // Predicated region
        $region89: #{tpu_custom_call.1} parent=67 // pred_check
          %p481 = pneg %p180
        $region90: #{tpu_custom_call.1} parent=67 // pred_check_branch
          %483 = sbr.rel (%p481) target = $region92
        $region91: #{tpu_custom_call.1} parent=67 // pred_region
          %484 = dma.done [#allocation12], 1024
        $region92: #{tpu_custom_call.1} parent=67 // pred_fallthru
          _
        // Predicated region
        $region93: #{tpu_custom_call.1} parent=67 // pred_check
          %p485 = pneg %p222
        $region94: #{tpu_custom_call.1} parent=67 // pred_check_branch
          %487 = sbr.rel (%p485) target = $region96
        $region95: #{tpu_custom_call.1} parent=67 // pred_region
          %488 = dma.done [#allocation12], 4096
        $region96: #{tpu_custom_call.1} parent=67 // pred_fallthru
          _
        // Predicated region
        $region97: #{tpu_custom_call.1} parent=67 // pred_check
          %p489 = pneg %p264
        $region98: #{tpu_custom_call.1} parent=67 // pred_check_branch
          %491 = sbr.rel (%p489) target = $region100
        $region99: #{tpu_custom_call.1} parent=67 // pred_region
          %492 = dma.done [#allocation15], 4096
        $region100: #{tpu_custom_call.1} parent=67 // pred_fallthru
          _
        %s493 = sand.u32 %s41, 1
        %s494 = scalar_lea.sflag [#allocation3], %s493
        %s495 = sand.u32 %s41, 1
        %s496 = smul.addr %s495, 8
        %s497 = scalar_lea.vmem [#allocation2], %s496
        %p498 = pneg %p54
        %p499 = pneg %p51
        %p500 = pneg %p75
        %p501 = pneg %p72
        %p502 = pneg %p96
        %p503 = pneg %p93
        %p504 = pneg %p117
        %p505 = pneg %p114
        %p506 = pneg %p138
        %p507 = pneg %p135
        %p508 = pneg %p159
        %p509 = pneg %p156
        %p510 = pneg %p180
        %p511 = pneg %p177
        %p512 = pneg %p201
        %p513 = pneg %p198
        %p514 = pneg %p222
        %p515 = pneg %p219
        %p516 = pneg %p243
        %p517 = pneg %p240
        %p518 = pneg %p264
        %p519 = pneg %p261
        %p520 = pneg %p285
        %p521 = pneg %p282
        %p522 = pneg %p311
        %p523 = pneg %p308
        %s524 = sand.u32 %s298, 1
        %s525 = scalar_lea.sflag [#allocation4], %s524
        %s526 = sand.u32 %s298, 1
        %s527 = smul.addr %s526, 8
        %s528 = scalar_lea.vmem [#allocation16], %s527
        %v530 = vld [vmem:[%s460] sm:$0xff]
        %v531 = vld [vmem:[#allocation5] sm:$0xf]
        %v532 = vld [vmem:[#allocation7] sm:$0xff]
        %v533 = vld [vmem:[#allocation7 + $0x8] sm:$0xff]
        %v534 = vld [vmem:[#allocation7 + $0x10] sm:$0xff]
        %v535 = vld [vmem:[#allocation7 + $0x18] sm:$0xff]
        %v536 = vld [vmem:[#allocation7 + $0x20] sm:$0xff]
        %v537 = vld [vmem:[#allocation7 + $0x28] sm:$0xff]
        %v538 = vld [vmem:[#allocation7 + $0x30] sm:$0xff]
        %v539 = vld [vmem:[#allocation7 + $0x38] sm:$0xff]
        %v540 = vld [vmem:[#allocation7 + $0x40] sm:$0xff]
        %v541 = vld [vmem:[#allocation7 + $0x48] sm:$0xff]
        %v542 = vld [vmem:[#allocation7 + $0x50] sm:$0xff]
        %v543 = vld [vmem:[#allocation7 + $0x58] sm:$0xff]
        %v544 = vld [vmem:[#allocation7 + $0x60] sm:$0xff]
        %v545 = vld [vmem:[#allocation7 + $0x68] sm:$0xff]
        %v546 = vld [vmem:[#allocation7 + $0x70] sm:$0xff]
        %v547 = vld [vmem:[#allocation7 + $0x78] sm:$0xff]
        %548 = vmatprep.subr.mxu0 0.0
        %549 = vmatpush1.msra.mxu0 %v532
        %550 = vmatprep.subr.mxu0 0.0
        %551 = vmatpush1.msra.mxu0 %v533
        %552 = vmatprep.subr.mxu0 0.0
        %553 = vmatpush1.msra.mxu0 %v534
        %554 = vmatprep.subr.mxu0 0.0
        %555 = vmatpush1.msra.mxu0 %v535
        %556 = vmatprep.subr.mxu0 0.0
        %557 = vmatpush1.msra.mxu0 %v536
        %558 = vmatprep.subr.mxu0 0.0
        %559 = vmatpush1.msra.mxu0 %v537
        %560 = vmatprep.subr.mxu0 0.0
        %561 = vmatpush1.msra.mxu0 %v538
        %562 = vmatprep.subr.mxu0 0.0
        %563 = vmatpush1.msra.mxu0 %v539
        %564 = vmatprep.subr.mxu0 0.0
        %565 = vmatpush1.msra.mxu0 %v540
        %566 = vmatprep.subr.mxu0 0.0
        %567 = vmatpush1.msra.mxu0 %v541
        %568 = vmatprep.subr.mxu0 0.0
        %569 = vmatpush1.msra.mxu0 %v542
        %570 = vmatprep.subr.mxu0 0.0
        %571 = vmatpush1.msra.mxu0 %v543
        %572 = vmatprep.subr.mxu0 0.0
        %573 = vmatpush1.msra.mxu0 %v544
        %574 = vmatprep.subr.mxu0 0.0
        %575 = vmatpush1.msra.mxu0 %v545
        %576 = vmatprep.subr.mxu0 0.0
        %577 = vmatpush1.msra.mxu0 %v546
        %578 = vmatprep.subr.mxu0 0.0
        %579 = vmatpush1.msra.mxu0 %v547
        %580 = vmatprep.subr.mxu0 0.0
        %581 = vmatpush1.msra.mxu0 0.0
        %582 = vmatprep.subr.mxu0 0.0
        %583 = vmatpush1.msra.mxu0 0.0
        %584 = vmatprep.subr.mxu0 0.0
        %585 = vmatpush1.msra.mxu0 0.0
        %586 = vmatprep.subr.mxu0 0.0
        %587 = vmatpush1.msra.mxu0 0.0
        %588 = vmatprep.subr.mxu0 0.0
        %589 = vmatpush1.msra.mxu0 0.0
        %590 = vmatprep.subr.mxu0 0.0
        %591 = vmatpush1.msra.mxu0 0.0
        %592 = vmatprep.subr.mxu0 0.0
        %593 = vmatpush1.msra.mxu0 0.0
        %594 = vmatprep.subr.mxu0 0.0
        %595 = vmatpush1.msra.mxu0 0.0
        %596 = vmatprep.subr.mxu0 0.0
        %597 = vmatpush1.msra.mxu0 0.0
        %598 = vmatprep.subr.mxu0 0.0
        %599 = vmatpush1.msra.mxu0 0.0
        %600 = vmatprep.subr.mxu0 0.0
        %601 = vmatpush1.msra.mxu0 0.0
        %602 = vmatprep.subr.mxu0 0.0
        %603 = vmatpush1.msra.mxu0 0.0
        %604 = vmatprep.subr.mxu0 0.0
        %605 = vmatpush1.msra.mxu0 0.0
        %606 = vmatprep.subr.mxu0 0.0
        %607 = vmatpush1.msra.mxu0 0.0
        %608 = vmatprep.subr.mxu0 0.0
        %609 = vmatpush1.msra.mxu0 0.0
        %610 = vmatprep.subr.mxu0 0.0
        %611 = vmatpush1.msra.mxu0 0.0
        %612 = vmatprep.mubr.f32.mxu0 0.0
        %613 = vmatmul.mubr.f32.gmra.mrb[0].mxu0 %v530
        %v614 = vpop.f32.mrb[0].mxu0
        %v615 = vadd.f32 0.0, %v614
        %v616 = vpop.f32.mrb[0].mxu0
        %617 = vdwg.mxu0
        %v618 = vsub.f32 %v530, %v615
        %v619 = vmul.f32 %v618, %v618
        %620 = vmatprep.subr.mxu0 0.0
        %621 = vmatpush1.msra.mxu0 %v532
        %622 = vmatprep.subr.mxu0 0.0
        %623 = vmatpush1.msra.mxu0 %v533
        %624 = vmatprep.subr.mxu0 0.0
        %625 = vmatpush1.msra.mxu0 %v534
        %626 = vmatprep.subr.mxu0 0.0
        %627 = vmatpush1.msra.mxu0 %v535
        %628 = vmatprep.subr.mxu0 0.0
        %629 = vmatpush1.msra.mxu0 %v536
        %630 = vmatprep.subr.mxu0 0.0
        %631 = vmatpush1.msra.mxu0 %v537
        %632 = vmatprep.subr.mxu0 0.0
        %633 = vmatpush1.msra.mxu0 %v538
        %634 = vmatprep.subr.mxu0 0.0
        %635 = vmatpush1.msra.mxu0 %v539
        %636 = vmatprep.subr.mxu0 0.0
        %637 = vmatpush1.msra.mxu0 %v540
        %638 = vmatprep.subr.mxu0 0.0
        %639 = vmatpush1.msra.mxu0 %v541
        %640 = vmatprep.subr.mxu0 0.0
        %641 = vmatpush1.msra.mxu0 %v542
        %642 = vmatprep.subr.mxu0 0.0
        %643 = vmatpush1.msra.mxu0 %v543
        %644 = vmatprep.subr.mxu0 0.0
        %645 = vmatpush1.msra.mxu0 %v544
        %646 = vmatprep.subr.mxu0 0.0
        %647 = vmatpush1.msra.mxu0 %v545
        %648 = vmatprep.subr.mxu0 0.0
        %649 = vmatpush1.msra.mxu0 %v546
        %650 = vmatprep.subr.mxu0 0.0
        %651 = vmatpush1.msra.mxu0 %v547
        %652 = vmatprep.subr.mxu0 0.0
        %653 = vmatpush1.msra.mxu0 0.0
        %654 = vmatprep.subr.mxu0 0.0
        %655 = vmatpush1.msra.mxu0 0.0
        %656 = vmatprep.subr.mxu0 0.0
        %657 = vmatpush1.msra.mxu0 0.0
        %658 = vmatprep.subr.mxu0 0.0
        %659 = vmatpush1.msra.mxu0 0.0
        %660 = vmatprep.subr.mxu0 0.0
        %661 = vmatpush1.msra.mxu0 0.0
        %662 = vmatprep.subr.mxu0 0.0
        %663 = vmatpush1.msra.mxu0 0.0
        %664 = vmatprep.subr.mxu0 0.0
        %665 = vmatpush1.msra.mxu0 0.0
        %666 = vmatprep.subr.mxu0 0.0
        %667 = vmatpush1.msra.mxu0 0.0
        %668 = vmatprep.subr.mxu0 0.0
        %669 = vmatpush1.msra.mxu0 0.0
        %670 = vmatprep.subr.mxu0 0.0
        %671 = vmatpush1.msra.mxu0 0.0
        %672 = vmatprep.subr.mxu0 0.0
        %673 = vmatpush1.msra.mxu0 0.0
        %674 = vmatprep.subr.mxu0 0.0
        %675 = vmatpush1.msra.mxu0 0.0
        %676 = vmatprep.subr.mxu0 0.0
        %677 = vmatpush1.msra.mxu0 0.0
        %678 = vmatprep.subr.mxu0 0.0
        %679 = vmatpush1.msra.mxu0 0.0
        %680 = vmatprep.subr.mxu0 0.0
        %681 = vmatpush1.msra.mxu0 0.0
        %682 = vmatprep.subr.mxu0 0.0
        %683 = vmatpush1.msra.mxu0 0.0
        %684 = vmatprep.mubr.f32.mxu0 0.0
        %685 = vmatmul.mubr.f32.gmra.mrb[0].mxu0 %v619
        %v686 = vpop.f32.mrb[0].mxu0
        %v687 = vadd.f32 1e-06, %v686
        %v688 = vpop.f32.mrb[0].mxu0
        %689 = vdwg.mxu0
        %v690 = vrsqrt.pop %v687
        %v691 = vmul.f32 %v618, %v690
        %v692 = vlaneseq
        %v693 = vshrl.u32 %v692, 7
        %v694 = vsub.s32 0, %v693
        %v695 = vrot.slane %v531, %v694
        %v696 = vmul.f32 %v691, %v695
        %v697 = vlaneseq
        %v698 = vshrl.u32 %v697, 7
        %v699 = vsub.s32 1, %v698
        %v700 = vrot.slane %v531, %v699
        %v701 = vadd.f32 %v696, %v700
        %v702 = vpack.c.bf16 %v701, %v701
        %v703 = vld [vmem:[#allocation8] sm:$0xff]
        %v704 = vld [vmem:[#allocation8 + $0x8] sm:$0xf]
        %v705 = vld [vmem:[#allocation8 + $0xc] sm:$0xff]
        %v706 = vld [vmem:[#allocation8 + $0x14] sm:$0xf]
        %v707 = vld [vmem:[#allocation8 + $0x18] sm:$0xff]
        %v708 = vld [vmem:[#allocation8 + $0x20] sm:$0xf]
        %v709 = vld [vmem:[#allocation8 + $0x24] sm:$0xff]
        %v710 = vld [vmem:[#allocation8 + $0x2c] sm:$0xf]
        %v711 = vld [vmem:[#allocation8 + $0x30] sm:$0xff]
        %v712 = vld [vmem:[#allocation8 + $0x38] sm:$0xf]
        %v713 = vld [vmem:[#allocation8 + $0x3c] sm:$0xff]
        %v714 = vld [vmem:[#allocation8 + $0x44] sm:$0xf]
        %v715 = vld [vmem:[#allocation8 + $0x48] sm:$0xff]
        %v716 = vld [vmem:[#allocation8 + $0x50] sm:$0xf]
        %v717 = vld [vmem:[#allocation8 + $0x54] sm:$0xff]
        %v718 = vld [vmem:[#allocation8 + $0x5c] sm:$0xf]
        %v719 = vld [vmem:[#allocation8 + $0x60] sm:$0xff]
        %v720 = vld [vmem:[#allocation8 + $0x68] sm:$0xf]
        %v721 = vld [vmem:[#allocation8 + $0x6c] sm:$0xff]
        %v722 = vld [vmem:[#allocation8 + $0x74] sm:$0xf]
        %v723 = vld [vmem:[#allocation8 + $0x78] sm:$0xff]
        %v724 = vld [vmem:[#allocation8 + $0x80] sm:$0xf]
        %v725 = vld [vmem:[#allocation8 + $0x84] sm:$0xff]
        %v726 = vld [vmem:[#allocation8 + $0x8c] sm:$0xf]
        %v727 = vld [vmem:[#allocation8 + $0x90] sm:$0xff]
        %v728 = vld [vmem:[#allocation8 + $0x98] sm:$0xf]
        %v729 = vld [vmem:[#allocation8 + $0x9c] sm:$0xff]
        %v730 = vld [vmem:[#allocation8 + $0xa4] sm:$0xf]
        %v731 = vld [vmem:[#allocation8 + $0xa8] sm:$0xff]
        %v732 = vld [vmem:[#allocation8 + $0xb0] sm:$0xf]
        %v733 = vld [vmem:[#allocation8 + $0xb4] sm:$0xff]
        %v734 = vld [vmem:[#allocation8 + $0xbc] sm:$0xf]
        %v735 = vld [vmem:[%s4] sm:$0x7]
        %v737 = vlaneseq
        %v738 = vshrl.u32 %v737, 7
        %v739 = vsub.s32 0, %v738
        %v740 = vrot.slane %v735, %v739
        %v741 = vlaneseq
        %v742 = vshrl.u32 %v741, 7
        %v743 = vsub.s32 1, %v742
        %v744 = vrot.slane %v735, %v743
        %v745 = vlaneseq
        %v746 = vshrl.u32 %v745, 7
        %v747 = vsub.s32 2, %v746
        %v748 = vrot.slane %v735, %v747
        %v784 = vunpack.c.l.b16 %v703
        %v785 = vunpack.c.h.b16 %v703
        %v786 = vunpack.c.l.b16 %v704
        %v787 = vunpack.c.l.b16 %v705
        %v788 = vunpack.c.h.b16 %v705
        %v789 = vunpack.c.l.b16 %v706
        %v790 = vunpack.c.l.b16 %v707
        %v791 = vunpack.c.h.b16 %v707
        %v792 = vunpack.c.l.b16 %v708
        %v793 = vunpack.c.l.b16 %v709
        %v794 = vunpack.c.h.b16 %v709
        %v795 = vunpack.c.l.b16 %v710
        %v796 = vunpack.c.l.b16 %v711
        %v797 = vunpack.c.h.b16 %v711
        %v798 = vunpack.c.l.b16 %v712
        %v799 = vunpack.c.l.b16 %v713
        %v800 = vunpack.c.h.b16 %v713
        %v801 = vunpack.c.l.b16 %v714
        %v802 = vunpack.c.l.b16 %v715
        %v803 = vunpack.c.h.b16 %v715
        %v804 = vunpack.c.l.b16 %v716
        %v805 = vunpack.c.l.b16 %v717
        %v806 = vunpack.c.h.b16 %v717
        %v807 = vunpack.c.l.b16 %v718
        %v808 = vunpack.c.l.b16 %v719
        %v809 = vunpack.c.h.b16 %v719
        %v810 = vunpack.c.l.b16 %v720
        %v811 = vunpack.c.l.b16 %v721
        %v812 = vunpack.c.h.b16 %v721
        %v813 = vunpack.c.l.b16 %v722
        %v814 = vunpack.c.l.b16 %v723
        %v815 = vunpack.c.h.b16 %v723
        %v816 = vunpack.c.l.b16 %v724
        %v817 = vunpack.c.l.b16 %v725
        %v818 = vunpack.c.h.b16 %v725
        %v819 = vunpack.c.l.b16 %v726
        %v820 = vunpack.c.l.b16 %v727
        %v821 = vunpack.c.h.b16 %v727
        %v822 = vunpack.c.l.b16 %v728
        %v823 = vunpack.c.l.b16 %v729
        %v824 = vunpack.c.h.b16 %v729
        %v825 = vunpack.c.l.b16 %v730
        %v826 = vunpack.c.l.b16 %v731
        %v827 = vunpack.c.h.b16 %v731
        %v828 = vunpack.c.l.b16 %v732
        %v829 = vunpack.c.l.b16 %v733
        %v830 = vunpack.c.h.b16 %v733
        %v831 = vunpack.c.l.b16 %v734
        %v832 = vpack.c.b16 %v787, %v784
        %v833 = vpack.c.b16 %v788, %v785
        %v834 = vpack.c.b16 %v789, %v786
        %v835 = vpack.c.b16 %v793, %v790
        %v836 = vpack.c.b16 %v794, %v791
        %v837 = vpack.c.b16 %v795, %v792
        %v838 = vpack.c.b16 %v799, %v796
        %v839 = vpack.c.b16 %v800, %v797
        %v840 = vpack.c.b16 %v801, %v798
        %v841 = vpack.c.b16 %v805, %v802
        %v842 = vpack.c.b16 %v806, %v803
        %v843 = vpack.c.b16 %v807, %v804
        %v844 = vpack.c.b16 %v811, %v808
        %v845 = vpack.c.b16 %v812, %v809
        %v846 = vpack.c.b16 %v813, %v810
        %v847 = vpack.c.b16 %v817, %v814
        %v848 = vpack.c.b16 %v818, %v815
        %v849 = vpack.c.b16 %v819, %v816
        %v850 = vpack.c.b16 %v823, %v820
        %v851 = vpack.c.b16 %v824, %v821
        %v852 = vpack.c.b16 %v825, %v822
        %v853 = vpack.c.b16 %v829, %v826
        %v854 = vpack.c.b16 %v830, %v827
        %v855 = vpack.c.b16 %v831, %v828
        %880 = vmatprep.subr.bf16.mxu0 %v833
        %881 = vmatpush1.bf16.msra.mxu0 %v832
        %882 = vmatprep.subr.bf16.mxu0 %v836
        %883 = vmatpush1.bf16.msra.mxu0 %v835
        %884 = vmatprep.subr.bf16.mxu0 %v839
        %885 = vmatpush1.bf16.msra.mxu0 %v838
        %886 = vmatprep.subr.bf16.mxu0 %v842
        %887 = vmatpush1.bf16.msra.mxu0 %v841
        %888 = vmatprep.subr.bf16.mxu0 %v845
        %889 = vmatpush1.bf16.msra.mxu0 %v844
        %890 = vmatprep.subr.bf16.mxu0 %v848
        %891 = vmatpush1.bf16.msra.mxu0 %v847
        %892 = vmatprep.subr.bf16.mxu0 %v851
        %893 = vmatpush1.bf16.msra.mxu0 %v850
        %894 = vmatprep.subr.bf16.mxu0 %v854
        %895 = vmatpush1.bf16.msra.mxu0 %v853
        %896 = vmatprep.subr.bf16.mxu0 0
        %897 = vmatpush1.bf16.msra.mxu0 0
        %898 = vmatprep.subr.bf16.mxu0 0
        %899 = vmatpush1.bf16.msra.mxu0 0
        %900 = vmatprep.subr.bf16.mxu0 0
        %901 = vmatpush1.bf16.msra.mxu0 0
        %902 = vmatprep.subr.bf16.mxu0 0
        %903 = vmatpush1.bf16.msra.mxu0 0
        %904 = vmatprep.subr.bf16.mxu0 0
        %905 = vmatpush1.bf16.msra.mxu0 0
        %906 = vmatprep.subr.bf16.mxu0 0
        %907 = vmatpush1.bf16.msra.mxu0 0
        %908 = vmatprep.subr.bf16.mxu0 0
        %909 = vmatpush1.bf16.msra.mxu0 0
        %910 = vmatprep.subr.bf16.mxu0 0
        %911 = vmatpush1.bf16.msra.mxu0 0
        %912 = vmatprep.mubr.bf16.mxu0 0
        %913 = vmatmul.mubr.bf16.gmra.mrb[0].mxu0 %v702
        %v914 = vpop.f32.mrb[0].mxu0
        %v915 = vadd.f32 %v740, %v914
        %v916 = vpop.f32.mrb[0].mxu0
        %v917 = vadd.f32 %v744, %v916
        %v918 = vpop.f32.mrb[0].mxu0
        %v919 = vpop.f32.mrb[0].mxu0
        %920 = vdwg.mxu0
        %921 = vmatprep.subr.bf16.mxu0 0
        %922 = vmatpush1.bf16.msra.mxu0 %v834
        %923 = vmatprep.subr.bf16.mxu0 0
        %924 = vmatpush1.bf16.msra.mxu0 %v837
        %925 = vmatprep.subr.bf16.mxu0 0
        %926 = vmatpush1.bf16.msra.mxu0 %v840
        %927 = vmatprep.subr.bf16.mxu0 0
        %928 = vmatpush1.bf16.msra.mxu0 %v843
        %929 = vmatprep.subr.bf16.mxu0 0
        %930 = vmatpush1.bf16.msra.mxu0 %v846
        %931 = vmatprep.subr.bf16.mxu0 0
        %932 = vmatpush1.bf16.msra.mxu0 %v849
        %933 = vmatprep.subr.bf16.mxu0 0
        %934 = vmatpush1.bf16.msra.mxu0 %v852
        %935 = vmatprep.subr.bf16.mxu0 0
        %936 = vmatpush1.bf16.msra.mxu0 %v855
        %937 = vmatprep.subr.bf16.mxu0 0
        %938 = vmatpush1.bf16.msra.mxu0 0
        %939 = vmatprep.subr.bf16.mxu0 0
        %940 = vmatpush1.bf16.msra.mxu0 0
        %941 = vmatprep.subr.bf16.mxu0 0
        %942 = vmatpush1.bf16.msra.mxu0 0
        %943 = vmatprep.subr.bf16.mxu0 0
        %944 = vmatpush1.bf16.msra.mxu0 0
        %945 = vmatprep.subr.bf16.mxu0 0
        %946 = vmatpush1.bf16.msra.mxu0 0
        %947 = vmatprep.subr.bf16.mxu0 0
        %948 = vmatpush1.bf16.msra.mxu0 0
        %949 = vmatprep.subr.bf16.mxu0 0
        %950 = vmatpush1.bf16.msra.mxu0 0
        %951 = vmatprep.subr.bf16.mxu0 0
        %952 = vmatpush1.bf16.msra.mxu0 0
        %953 = vmatprep.mubr.bf16.mxu0 0
        %954 = vmatmul.mubr.bf16.gmra.mrb[0].mxu0 %v702
        %v955 = vpop.f32.mrb[0].mxu0
        %v956 = vadd.f32 %v748, %v955
        %v957 = vpop.f32.mrb[0].mxu0
        %v958 = vpop.f32.mrb[0].mxu0
        %v959 = vpop.f32.mrb[0].mxu0
        %960 = vdwg.mxu0
        %v962 = vcombine.high %v915, %v915
        %v964 = vunpack.c.l.s4 1966171168
        %v965 = vunpack.c.0.s8 %v964
        %v966 = vlaneseq
        %v967 = vshrl.u32 %v966, 7
        %v968 = vsub.s32 %v965, %v967
        %v969 = vrot.slane %v915, %v968
        %v971 = vunpack.c.l.s4 1966171168
        %v972 = vunpack.c.0.s8 %v971
        %v973 = vlaneseq
        %v974 = vshrl.u32 %v973, 7
        %v975 = vsub.s32 %v972, %v974
        %v976 = vrot.slane %v962, %v975
        %v977 = vcombine.high %v969, %v969
        %v978 = vcombine.high %v976, %v976
        %v980 = vunpack.c.l.s4 1966171168
        %v981 = vunpack.c.0.s8 %v980
        %v982 = vlaneseq
        %v983 = vshrl.u32 %v982, 7
        %v984 = vsub.s32 %v981, %v983
        %v985 = vrot.slane %v969, %v984
        %v987 = vunpack.c.l.s4 1966171168
        %v988 = vunpack.c.0.s8 %v987
        %v989 = vlaneseq
        %v990 = vshrl.u32 %v989, 7
        %v991 = vsub.s32 %v988, %v990
        %v992 = vrot.slane %v976, %v991
        %v994 = vunpack.c.l.s4 1966171168
        %v995 = vunpack.c.0.s8 %v994
        %v996 = vlaneseq
        %v997 = vshrl.u32 %v996, 7
        %v998 = vsub.s32 %v995, %v997
        %v999 = vrot.slane %v977, %v998
        %v1001 = vunpack.c.l.s4 1966171168
        %v1002 = vunpack.c.0.s8 %v1001
        %v1003 = vlaneseq
        %v1004 = vshrl.u32 %v1003, 7
        %v1005 = vsub.s32 %v1002, %v1004
        %v1006 = vrot.slane %v978, %v1005
        %v1007 = vcombine.high %v985, %v985
        %v1008 = vcombine.high %v992, %v992
        %v1009 = vcombine.high %v999, %v999
        %v1010 = vcombine.high %v1006, %v1006
        %v1011 = vlaneseq
        %v1012 = vshrl.u32 %v1011, 7
        %v1013 = vsub.s32 0, %v1012
        %v1014 = vrot.slane %v985, %v1013
        %v1015 = vlaneseq
        %v1016 = vshrl.u32 %v1015, 7
        %v1017 = vsub.s32 0, %v1016
        %v1018 = vrot.slane %v999, %v1017
        %v1019 = vlaneseq
        %v1020 = vshrl.u32 %v1019, 7
        %v1021 = vsub.s32 0, %v1020
        %v1022 = vrot.slane %v1007, %v1021
        %v1023 = vlaneseq
        %v1024 = vshrl.u32 %v1023, 7
        %v1025 = vsub.s32 0, %v1024
        %v1026 = vrot.slane %v1009, %v1025
        %v1027 = vlaneseq
        %v1028 = vshrl.u32 %v1027, 7
        %v1029 = vsub.s32 0, %v1028
        %v1030 = vrot.slane %v992, %v1029
        %v1031 = vlaneseq
        %v1032 = vshrl.u32 %v1031, 7
        %v1033 = vsub.s32 0, %v1032
        %v1034 = vrot.slane %v1006, %v1033
        %v1035 = vlaneseq
        %v1036 = vshrl.u32 %v1035, 7
        %v1037 = vsub.s32 0, %v1036
        %v1038 = vrot.slane %v1008, %v1037
        %v1039 = vlaneseq
        %v1040 = vshrl.u32 %v1039, 7
        %v1041 = vsub.s32 0, %v1040
        %v1042 = vrot.slane %v1010, %v1041
        %v1051 = vmul.f32 %v1014, %v917
        %v1052 = vmul.f32 %v1018, %v917
        %v1053 = vmul.f32 %v1022, %v917
        %v1054 = vmul.f32 %v1026, %v917
        %v1055 = vmul.f32 %v1030, %v917
        %v1056 = vmul.f32 %v1034, %v917
        %v1057 = vmul.f32 %v1038, %v917
        %v1058 = vmul.f32 %v1042, %v917
        %v1059 = vpack.c.bf16 %v1052, %v1051
        %v1060 = vpack.c.bf16 %v1054, %v1053
        %v1061 = vpack.c.bf16 %v1056, %v1055
        %v1062 = vpack.c.bf16 %v1058, %v1057
        %v1063 = vld [vmem:[#allocation10] sm:$0xf]
        %v1064 = vld [vmem:[#allocation10 + $0x4] sm:$0xf]
        %v1065 = vld [vmem:[#allocation10 + $0x8] sm:$0xf]
        %v1066 = vld [vmem:[#allocation10 + $0xc] sm:$0xf]
        %v1067 = vld [vmem:[#allocation10 + $0x10] sm:$0xf]
        %v1068 = vld [vmem:[#allocation10 + $0x14] sm:$0xf]
        %v1069 = vld [vmem:[#allocation10 + $0x18] sm:$0xf]
        %v1070 = vld [vmem:[#allocation10 + $0x1c] sm:$0xf]
        %v1071 = vld [vmem:[#allocation10 + $0x20] sm:$0xf]
        %v1072 = vld [vmem:[#allocation10 + $0x24] sm:$0xf]
        %v1073 = vld [vmem:[#allocation10 + $0x28] sm:$0xf]
        %v1074 = vld [vmem:[#allocation10 + $0x2c] sm:$0xf]
        %v1075 = vld [vmem:[#allocation10 + $0x30] sm:$0xf]
        %v1076 = vld [vmem:[#allocation10 + $0x34] sm:$0xf]
        %v1077 = vld [vmem:[#allocation10 + $0x38] sm:$0xf]
        %v1078 = vld [vmem:[#allocation10 + $0x3c] sm:$0xf]
        %v1095 = vunpack.c.l.b16 %v1063
        %v1096 = vunpack.c.l.b16 %v1064
        %v1097 = vunpack.c.l.b16 %v1065
        %v1098 = vunpack.c.l.b16 %v1066
        %v1099 = vunpack.c.l.b16 %v1067
        %v1100 = vunpack.c.l.b16 %v1068
        %v1101 = vunpack.c.l.b16 %v1069
        %v1102 = vunpack.c.l.b16 %v1070
        %v1103 = vunpack.c.l.b16 %v1071
        %v1104 = vunpack.c.l.b16 %v1072
        %v1105 = vunpack.c.l.b16 %v1073
        %v1106 = vunpack.c.l.b16 %v1074
        %v1107 = vunpack.c.l.b16 %v1075
        %v1108 = vunpack.c.l.b16 %v1076
        %v1109 = vunpack.c.l.b16 %v1077
        %v1110 = vunpack.c.l.b16 %v1078
        %v1111 = vpack.c.b16 %v1096, %v1095
        %v1112 = vpack.c.b16 %v1098, %v1097
        %v1113 = vpack.c.b16 %v1100, %v1099
        %v1114 = vpack.c.b16 %v1102, %v1101
        %v1115 = vpack.c.b16 %v1104, %v1103
        %v1116 = vpack.c.b16 %v1106, %v1105
        %v1117 = vpack.c.b16 %v1108, %v1107
        %v1118 = vpack.c.b16 %v1110, %v1109
        %1127 = vmatprep.subr.bf16.mxu0 0
        %1128 = vmatpush1.bf16.msra.mxu0 %v1111
        %1129 = vmatprep.subr.bf16.mxu0 0
        %1130 = vmatpush1.bf16.msra.mxu0 %v1112
        %1131 = vmatprep.subr.bf16.mxu0 0
        %1132 = vmatpush1.bf16.msra.mxu0 %v1113
        %1133 = vmatprep.subr.bf16.mxu0 0
        %1134 = vmatpush1.bf16.msra.mxu0 %v1114
        %1135 = vmatprep.subr.bf16.mxu0 0
        %1136 = vmatpush1.bf16.msra.mxu0 %v1115
        %1137 = vmatprep.subr.bf16.mxu0 0
        %1138 = vmatpush1.bf16.msra.mxu0 %v1116
        %1139 = vmatprep.subr.bf16.mxu0 0
        %1140 = vmatpush1.bf16.msra.mxu0 %v1117
        %1141 = vmatprep.subr.bf16.mxu0 0
        %1142 = vmatpush1.bf16.msra.mxu0 %v1118
        %1143 = vmatprep.subr.bf16.mxu0 0
        %1144 = vmatpush1.bf16.msra.mxu0 0
        %1145 = vmatprep.subr.bf16.mxu0 0
        %1146 = vmatpush1.bf16.msra.mxu0 0
        %1147 = vmatprep.subr.bf16.mxu0 0
        %1148 = vmatpush1.bf16.msra.mxu0 0
        %1149 = vmatprep.subr.bf16.mxu0 0
        %1150 = vmatpush1.bf16.msra.mxu0 0
        %1151 = vmatprep.subr.bf16.mxu0 0
        %1152 = vmatpush1.bf16.msra.mxu0 0
        %1153 = vmatprep.subr.bf16.mxu0 0
        %1154 = vmatpush1.bf16.msra.mxu0 0
        %1155 = vmatprep.subr.bf16.mxu0 0
        %1156 = vmatpush1.bf16.msra.mxu0 0
        %1157 = vmatprep.subr.bf16.mxu0 0
        %1158 = vmatpush1.bf16.msra.mxu0 0
        %1159 = vmatprep.mubr.bf16.mxu0 0
        %1160 = vmatmul.mubr.bf16.gmra.mrb[0].mxu0 %v1059
        %v1161 = vpop.f32.mrb[0].mxu0
        %v1162 = vadd.f32 0.0, %v1161
        %v1163 = vpop.f32.mrb[0].mxu0
        %v1164 = vpop.f32.mrb[0].mxu0
        %v1165 = vadd.f32 0.0, %v1164
        %v1166 = vpop.f32.mrb[0].mxu0
        %1167 = vmatprep.mubr.bf16.mxu0 0
        %1168 = vmatmul.mubr.bf16.gmra.mrb[0].mxu0 %v1060
        %v1169 = vpop.f32.mrb[0].mxu0
        %v1170 = vadd.f32 0.0, %v1169
        %v1171 = vpop.f32.mrb[0].mxu0
        %v1172 = vpop.f32.mrb[0].mxu0
        %v1173 = vadd.f32 0.0, %v1172
        %v1174 = vpop.f32.mrb[0].mxu0
        %1175 = vmatprep.mubr.bf16.mxu0 0
        %1176 = vmatmul.mubr.bf16.gmra.mrb[0].mxu0 %v1061
        %v1177 = vpop.f32.mrb[0].mxu0
        %v1178 = vadd.f32 0.0, %v1177
        %v1179 = vpop.f32.mrb[0].mxu0
        %v1180 = vpop.f32.mrb[0].mxu0
        %v1181 = vadd.f32 0.0, %v1180
        %v1182 = vpop.f32.mrb[0].mxu0
        %1183 = vmatprep.mubr.bf16.mxu0 0
        %1184 = vmatmul.mubr.bf16.gmra.mrb[0].mxu0 %v1062
        %v1185 = vpop.f32.mrb[0].mxu0
        %v1186 = vadd.f32 0.0, %v1185
        %v1187 = vpop.f32.mrb[0].mxu0
        %v1188 = vpop.f32.mrb[0].mxu0
        %v1189 = vadd.f32 0.0, %v1188
        %v1190 = vpop.f32.mrb[0].mxu0
        %1191 = vdwg.mxu0
        %v1192 = vrot.slane %v1162, 4
        %v1193 = vmax.f32 %v1162, %v1192
        %v1194 = vrot.slane %v1193, 2
        %v1195 = vmax.f32 %v1193, %v1194
        %v1196 = vrot.slane %v1195, 1
        %v1197 = vmax.f32 %v1195, %v1196
        %v1198 = vrot.slane %v1165, 4
        %v1199 = vmax.f32 %v1165, %v1198
        %v1200 = vrot.slane %v1199, 2
        %v1201 = vmax.f32 %v1199, %v1200
        %v1202 = vrot.slane %v1201, 1
        %v1203 = vmax.f32 %v1201, %v1202
        %v1204 = vrot.slane %v1170, 4
        %v1205 = vmax.f32 %v1170, %v1204
        %v1206 = vrot.slane %v1205, 2
        %v1207 = vmax.f32 %v1205, %v1206
        %v1208 = vrot.slane %v1207, 1
        %v1209 = vmax.f32 %v1207, %v1208
        %v1210 = vrot.slane %v1173, 4
        %v1211 = vmax.f32 %v1173, %v1210
        %v1212 = vrot.slane %v1211, 2
        %v1213 = vmax.f32 %v1211, %v1212
        %v1214 = vrot.slane %v1213, 1
        %v1215 = vmax.f32 %v1213, %v1214
        %v1216 = vrot.slane %v1178, 4
        %v1217 = vmax.f32 %v1178, %v1216
        %v1218 = vrot.slane %v1217, 2
        %v1219 = vmax.f32 %v1217, %v1218
        %v1220 = vrot.slane %v1219, 1
        %v1221 = vmax.f32 %v1219, %v1220
        %v1222 = vrot.slane %v1181, 4
        %v1223 = vmax.f32 %v1181, %v1222
        %v1224 = vrot.slane %v1223, 2
        %v1225 = vmax.f32 %v1223, %v1224
        %v1226 = vrot.slane %v1225, 1
        %v1227 = vmax.f32 %v1225, %v1226
        %v1228 = vrot.slane %v1186, 4
        %v1229 = vmax.f32 %v1186, %v1228
        %v1230 = vrot.slane %v1229, 2
        %v1231 = vmax.f32 %v1229, %v1230
        %v1232 = vrot.slane %v1231, 1
        %v1233 = vmax.f32 %v1231, %v1232
        %v1234 = vrot.slane %v1189, 4
        %v1235 = vmax.f32 %v1189, %v1234
        %v1236 = vrot.slane %v1235, 2
        %v1237 = vmax.f32 %v1235, %v1236
        %v1238 = vrot.slane %v1237, 1
        %v1239 = vmax.f32 %v1237, %v1238
        %v1240 = vsub.f32 %v1162, %v1197
        %v1241 = vsub.f32 %v1165, %v1203
        %v1242 = vsub.f32 %v1170, %v1209
        %v1243 = vsub.f32 %v1173, %v1215
        %v1244 = vsub.f32 %v1178, %v1221
        %v1245 = vsub.f32 %v1181, %v1227
        %v1246 = vsub.f32 %v1186, %v1233
        %v1247 = vsub.f32 %v1189, %v1239
        %v1248 = vmul.f32 %v1240, 1.442695
        %v1249 = vpow.pop %v1248
        %v1250 = vmul.f32 %v1241, 1.442695
        %v1251 = vpow.pop %v1250
        %v1252 = vmul.f32 %v1242, 1.442695
        %v1253 = vpow.pop %v1252
        %v1254 = vmul.f32 %v1243, 1.442695
        %v1255 = vpow.pop %v1254
        %v1256 = vmul.f32 %v1244, 1.442695
        %v1257 = vpow.pop %v1256
        %v1258 = vmul.f32 %v1245, 1.442695
        %v1259 = vpow.pop %v1258
        %v1260 = vmul.f32 %v1246, 1.442695
        %v1261 = vpow.pop %v1260
        %v1262 = vmul.f32 %v1247, 1.442695
        %v1263 = vpow.pop %v1262
        %v1264 = vrot.slane %v1249, 4
        %v1265 = vadd.f32 %v1249, %v1264
        %v1266 = vrot.slane %v1265, 2
        %v1267 = vadd.f32 %v1265, %v1266
        %v1268 = vrot.slane %v1267, 1
        %v1269 = vadd.f32 %v1267, %v1268
        %v1270 = vrot.slane %v1251, 4
        %v1271 = vadd.f32 %v1251, %v1270
        %v1272 = vrot.slane %v1271, 2
        %v1273 = vadd.f32 %v1271, %v1272
        %v1274 = vrot.slane %v1273, 1
        %v1275 = vadd.f32 %v1273, %v1274
        %v1276 = vrot.slane %v1253, 4
        %v1277 = vadd.f32 %v1253, %v1276
        %v1278 = vrot.slane %v1277, 2
        %v1279 = vadd.f32 %v1277, %v1278
        %v1280 = vrot.slane %v1279, 1
        %v1281 = vadd.f32 %v1279, %v1280
        %v1282 = vrot.slane %v1255, 4
        %v1283 = vadd.f32 %v1255, %v1282
        %v1284 = vrot.slane %v1283, 2
        %v1285 = vadd.f32 %v1283, %v1284
        %v1286 = vrot.slane %v1285, 1
        %v1287 = vadd.f32 %v1285, %v1286
        %v1288 = vrot.slane %v1257, 4
        %v1289 = vadd.f32 %v1257, %v1288
        %v1290 = vrot.slane %v1289, 2
        %v1291 = vadd.f32 %v1289, %v1290
        %v1292 = vrot.slane %v1291, 1
        %v1293 = vadd.f32 %v1291, %v1292
        %v1294 = vrot.slane %v1259, 4
        %v1295 = vadd.f32 %v1259, %v1294
        %v1296 = vrot.slane %v1295, 2
        %v1297 = vadd.f32 %v1295, %v1296
        %v1298 = vrot.slane %v1297, 1
        %v1299 = vadd.f32 %v1297, %v1298
        %v1300 = vrot.slane %v1261, 4
        %v1301 = vadd.f32 %v1261, %v1300
        %v1302 = vrot.slane %v1301, 2
        %v1303 = vadd.f32 %v1301, %v1302
        %v1304 = vrot.slane %v1303, 1
        %v1305 = vadd.f32 %v1303, %v1304
        %v1306 = vrot.slane %v1263, 4
        %v1307 = vadd.f32 %v1263, %v1306
        %v1308 = vrot.slane %v1307, 2
        %v1309 = vadd.f32 %v1307, %v1308
        %v1310 = vrot.slane %v1309, 1
        %v1311 = vadd.f32 %v1309, %v1310
        %v1312 = vrcp.pop %v1269
        %v1313 = vrcp.pop %v1275
        %v1314 = vrcp.pop %v1281
        %v1315 = vrcp.pop %v1287
        %v1316 = vrcp.pop %v1293
        %v1317 = vrcp.pop %v1299
        %v1318 = vrcp.pop %v1305
        %v1319 = vrcp.pop %v1311
        %v1320 = vmul.f32 %v1249, %v1312
        %v1321 = vmul.f32 %v1251, %v1313
        %v1322 = vmul.f32 %v1253, %v1314
        %v1323 = vmul.f32 %v1255, %v1315
        %v1324 = vmul.f32 %v1257, %v1316
        %v1325 = vmul.f32 %v1259, %v1317
        %v1326 = vmul.f32 %v1261, %v1318
        %v1327 = vmul.f32 %v1263, %v1319
        %v1328 = vmul.f32 %v1320, %v956
        %v1329 = vmul.f32 %v1321, %v956
        %v1330 = vmul.f32 %v1322, %v956
        %v1331 = vmul.f32 %v1323, %v956
        %v1332 = vmul.f32 %v1324, %v956
        %v1333 = vmul.f32 %v1325, %v956
        %v1334 = vmul.f32 %v1326, %v956
        %v1335 = vmul.f32 %v1327, %v956
        %v1336 = vrot.slane %v1328, 4
        %v1337 = vadd.f32 %v1328, %v1336
        %v1338 = vrot.slane %v1337, 2
        %v1339 = vadd.f32 %v1337, %v1338
        %v1340 = vrot.slane %v1339, 1
        %v1341 = vadd.f32 %v1339, %v1340
        %v1342 = vrot.slane %v1329, 4
        %v1343 = vadd.f32 %v1329, %v1342
        %v1344 = vrot.slane %v1343, 2
        %v1345 = vadd.f32 %v1343, %v1344
        %v1346 = vrot.slane %v1345, 1
        %v1347 = vadd.f32 %v1345, %v1346
        %v1348 = vrot.slane %v1330, 4
        %v1349 = vadd.f32 %v1330, %v1348
        %v1350 = vrot.slane %v1349, 2
        %v1351 = vadd.f32 %v1349, %v1350
        %v1352 = vrot.slane %v1351, 1
        %v1353 = vadd.f32 %v1351, %v1352
        %v1354 = vrot.slane %v1331, 4
        %v1355 = vadd.f32 %v1331, %v1354
        %v1356 = vrot.slane %v1355, 2
        %v1357 = vadd.f32 %v1355, %v1356
        %v1358 = vrot.slane %v1357, 1
        %v1359 = vadd.f32 %v1357, %v1358
        %v1360 = vrot.slane %v1332, 4
        %v1361 = vadd.f32 %v1332, %v1360
        %v1362 = vrot.slane %v1361, 2
        %v1363 = vadd.f32 %v1361, %v1362
        %v1364 = vrot.slane %v1363, 1
        %v1365 = vadd.f32 %v1363, %v1364
        %v1366 = vrot.slane %v1333, 4
        %v1367 = vadd.f32 %v1333, %v1366
        %v1368 = vrot.slane %v1367, 2
        %v1369 = vadd.f32 %v1367, %v1368
        %v1370 = vrot.slane %v1369, 1
        %v1371 = vadd.f32 %v1369, %v1370
        %v1372 = vrot.slane %v1334, 4
        %v1373 = vadd.f32 %v1334, %v1372
        %v1374 = vrot.slane %v1373, 2
        %v1375 = vadd.f32 %v1373, %v1374
        %v1376 = vrot.slane %v1375, 1
        %v1377 = vadd.f32 %v1375, %v1376
        %v1378 = vrot.slane %v1335, 4
        %v1379 = vadd.f32 %v1335, %v1378
        %v1380 = vrot.slane %v1379, 2
        %v1381 = vadd.f32 %v1379, %v1380
        %v1382 = vrot.slane %v1381, 1
        %v1383 = vadd.f32 %v1381, %v1382
        %v1384 = vpack.c.bf16 %v1341, %v1341
        %v1385 = vpack.c.bf16 %v1347, %v1347
        %v1386 = vpack.c.bf16 %v1353, %v1353
        %v1387 = vpack.c.bf16 %v1359, %v1359
        %v1388 = vpack.c.bf16 %v1365, %v1365
        %v1389 = vpack.c.bf16 %v1371, %v1371
        %v1390 = vpack.c.bf16 %v1377, %v1377
        %v1391 = vpack.c.bf16 %v1383, %v1383
        %v1392 = vld [vmem:[#allocation11] sm:$0xf]
        %v1393 = vld [vmem:[#allocation11 + $0x4] sm:$0xf]
        %v1394 = vld [vmem:[#allocation11 + $0x8] sm:$0xf]
        %v1395 = vld [vmem:[#allocation11 + $0xc] sm:$0xf]
        %v1396 = vld [vmem:[#allocation11 + $0x10] sm:$0xf]
        %v1397 = vld [vmem:[#allocation11 + $0x14] sm:$0xf]
        %v1398 = vld [vmem:[#allocation11 + $0x18] sm:$0xf]
        %v1399 = vld [vmem:[#allocation11 + $0x1c] sm:$0xf]
        %v1400 = vld [vmem:[#allocation11 + $0x20] sm:$0xf]
        %v1401 = vld [vmem:[#allocation11 + $0x24] sm:$0xf]
        %v1402 = vld [vmem:[#allocation11 + $0x28] sm:$0xf]
        %v1403 = vld [vmem:[#allocation11 + $0x2c] sm:$0xf]
        %v1404 = vld [vmem:[#allocation11 + $0x30] sm:$0xf]
        %v1405 = vld [vmem:[#allocation11 + $0x34] sm:$0xf]
        %v1406 = vld [vmem:[#allocation11 + $0x38] sm:$0xf]
        %v1407 = vld [vmem:[#allocation11 + $0x3c] sm:$0xf]
        %v1408 = vld [vmem:[%s7] sm:$0x1]
        %v1410 = vlaneseq
        %v1411 = vshrl.u32 %v1410, 7
        %v1412 = vsub.s32 0, %v1411
        %v1413 = vrot.slane %v1408, %v1412
        %v1423 = vunpack.c.l.b16 %v1384
        %v1424 = vunpack.c.l.b16 %v1385
        %v1425 = vunpack.c.l.b16 %v1386
        %v1426 = vunpack.c.l.b16 %v1387
        %v1427 = vunpack.c.l.b16 %v1388
        %v1428 = vunpack.c.l.b16 %v1389
        %v1429 = vunpack.c.l.b16 %v1390
        %v1430 = vunpack.c.l.b16 %v1391
        %vm1431 = vcmask 1041409
        %v1432 = vsel %vm1431, %v1424, %v1423
        %vm1433 = vcmask 1042434
        %v1434 = vsel %vm1433, %v1425, %v1432
        %vm1435 = vcmask 1043459
        %v1436 = vsel %vm1435, %v1426, %v1434
        %vm1437 = vcmask 1044484
        %v1438 = vsel %vm1437, %v1427, %v1436
        %vm1439 = vcmask 1045509
        %v1440 = vsel %vm1439, %v1428, %v1438
        %vm1441 = vcmask 1046534
        %v1442 = vsel %vm1441, %v1429, %v1440
        %vm1443 = vcmask 1047559
        %v1444 = vsel %vm1443, %v1430, %v1442
        %v1445 = vpack.c.b16 %v1444, %v1444
        %v1463 = vunpack.c.l.b16 %v1392
        %v1464 = vunpack.c.l.b16 %v1393
        %v1465 = vunpack.c.l.b16 %v1394
        %v1466 = vunpack.c.l.b16 %v1395
        %v1467 = vunpack.c.l.b16 %v1396
        %v1468 = vunpack.c.l.b16 %v1397
        %v1469 = vunpack.c.l.b16 %v1398
        %v1470 = vunpack.c.l.b16 %v1399
        %v1471 = vunpack.c.l.b16 %v1400
        %v1472 = vunpack.c.l.b16 %v1401
        %v1473 = vunpack.c.l.b16 %v1402
        %v1474 = vunpack.c.l.b16 %v1403
        %v1475 = vunpack.c.l.b16 %v1404
        %v1476 = vunpack.c.l.b16 %v1405
        %v1477 = vunpack.c.l.b16 %v1406
        %v1478 = vunpack.c.l.b16 %v1407
        %v1479 = vpack.c.b16 %v1464, %v1463
        %v1480 = vpack.c.b16 %v1466, %v1465
        %v1481 = vpack.c.b16 %v1468, %v1467
        %v1482 = vpack.c.b16 %v1470, %v1469
        %v1483 = vpack.c.b16 %v1472, %v1471
        %v1484 = vpack.c.b16 %v1474, %v1473
        %v1485 = vpack.c.b16 %v1476, %v1475
        %v1486 = vpack.c.b16 %v1478, %v1477
        %1495 = vmatprep.subr.bf16.mxu0 0
        %1496 = vmatpush1.bf16.msra.mxu0 %v1479
        %1497 = vmatprep.subr.bf16.mxu0 0
        %1498 = vmatpush1.bf16.msra.mxu0 %v1480
        %1499 = vmatprep.subr.bf16.mxu0 0
        %1500 = vmatpush1.bf16.msra.mxu0 %v1481
        %1501 = vmatprep.subr.bf16.mxu0 0
        %1502 = vmatpush1.bf16.msra.mxu0 %v1482
        %1503 = vmatprep.subr.bf16.mxu0 0
        %1504 = vmatpush1.bf16.msra.mxu0 %v1483
        %1505 = vmatprep.subr.bf16.mxu0 0
        %1506 = vmatpush1.bf16.msra.mxu0 %v1484
        %1507 = vmatprep.subr.bf16.mxu0 0
        %1508 = vmatpush1.bf16.msra.mxu0 %v1485
        %1509 = vmatprep.subr.bf16.mxu0 0
        %1510 = vmatpush1.bf16.msra.mxu0 %v1486
        %1511 = vmatprep.subr.bf16.mxu0 0
        %1512 = vmatpush1.bf16.msra.mxu0 0
        %1513 = vmatprep.subr.bf16.mxu0 0
        %1514 = vmatpush1.bf16.msra.mxu0 0
        %1515 = vmatprep.subr.bf16.mxu0 0
        %1516 = vmatpush1.bf16.msra.mxu0 0
        %1517 = vmatprep.subr.bf16.mxu0 0
        %1518 = vmatpush1.bf16.msra.mxu0 0
        %1519 = vmatprep.subr.bf16.mxu0 0
        %1520 = vmatpush1.bf16.msra.mxu0 0
        %1521 = vmatprep.subr.bf16.mxu0 0
        %1522 = vmatpush1.bf16.msra.mxu0 0
        %1523 = vmatprep.subr.bf16.mxu0 0
        %1524 = vmatpush1.bf16.msra.mxu0 0
        %1525 = vmatprep.subr.bf16.mxu0 0
        %1526 = vmatpush1.bf16.msra.mxu0 0
        %1527 = vmatprep.mubr.bf16.mxu0 0
        %1528 = vmatmul.mubr.bf16.gmra.mrb[0].mxu0 %v1445
        %v1529 = vpop.f32.mrb[0].mxu0
        %v1530 = vadd.f32 %v1413, %v1529
        %v1531 = vpop.f32.mrb[0].mxu0
        %v1532 = vpop.f32.mrb[0].mxu0
        %v1533 = vpop.f32.mrb[0].mxu0
        %1534 = vdwg.mxu0
        %v1535 = vadd.f32 %v530, %v1530
        %1536 = vmatprep.subr.mxu0 0.0
        %1537 = vmatpush1.msra.mxu0 %v532
        %1538 = vmatprep.subr.mxu0 0.0
        %1539 = vmatpush1.msra.mxu0 %v533
        %1540 = vmatprep.subr.mxu0 0.0
        %1541 = vmatpush1.msra.mxu0 %v534
        %1542 = vmatprep.subr.mxu0 0.0
        %1543 = vmatpush1.msra.mxu0 %v535
        %1544 = vmatprep.subr.mxu0 0.0
        %1545 = vmatpush1.msra.mxu0 %v536
        %1546 = vmatprep.subr.mxu0 0.0
        %1547 = vmatpush1.msra.mxu0 %v537
        %1548 = vmatprep.subr.mxu0 0.0
        %1549 = vmatpush1.msra.mxu0 %v538
        %1550 = vmatprep.subr.mxu0 0.0
        %1551 = vmatpush1.msra.mxu0 %v539
        %1552 = vmatprep.subr.mxu0 0.0
        %1553 = vmatpush1.msra.mxu0 %v540
        %1554 = vmatprep.subr.mxu0 0.0
        %1555 = vmatpush1.msra.mxu0 %v541
        %1556 = vmatprep.subr.mxu0 0.0
        %1557 = vmatpush1.msra.mxu0 %v542
        %1558 = vmatprep.subr.mxu0 0.0
        %1559 = vmatpush1.msra.mxu0 %v543
        %1560 = vmatprep.subr.mxu0 0.0
        %1561 = vmatpush1.msra.mxu0 %v544
        %1562 = vmatprep.subr.mxu0 0.0
        %1563 = vmatpush1.msra.mxu0 %v545
        %1564 = vmatprep.subr.mxu0 0.0
        %1565 = vmatpush1.msra.mxu0 %v546
        %1566 = vmatprep.subr.mxu0 0.0
        %1567 = vmatpush1.msra.mxu0 %v547
        %1568 = vmatprep.subr.mxu0 0.0
        %1569 = vmatpush1.msra.mxu0 0.0
        %1570 = vmatprep.subr.mxu0 0.0
        %1571 = vmatpush1.msra.mxu0 0.0
        %1572 = vmatprep.subr.mxu0 0.0
        %1573 = vmatpush1.msra.mxu0 0.0
        %1574 = vmatprep.subr.mxu0 0.0
        %1575 = vmatpush1.msra.mxu0 0.0
        %1576 = vmatprep.subr.mxu0 0.0
        %1577 = vmatpush1.msra.mxu0 0.0
        %1578 = vmatprep.subr.mxu0 0.0
        %1579 = vmatpush1.msra.mxu0 0.0
        %1580 = vmatprep.subr.mxu0 0.0
        %1581 = vmatpush1.msra.mxu0 0.0
        %1582 = vmatprep.subr.mxu0 0.0
        %1583 = vmatpush1.msra.mxu0 0.0
        %1584 = vmatprep.subr.mxu0 0.0
        %1585 = vmatpush1.msra.mxu0 0.0
        %1586 = vmatprep.subr.mxu0 0.0
        %1587 = vmatpush1.msra.mxu0 0.0
        %1588 = vmatprep.subr.mxu0 0.0
        %1589 = vmatpush1.msra.mxu0 0.0
        %1590 = vmatprep.subr.mxu0 0.0
        %1591 = vmatpush1.msra.mxu0 0.0
        %1592 = vmatprep.subr.mxu0 0.0
        %1593 = vmatpush1.msra.mxu0 0.0
        %1594 = vmatprep.subr.mxu0 0.0
        %1595 = vmatpush1.msra.mxu0 0.0
        %1596 = vmatprep.subr.mxu0 0.0
        %1597 = vmatpush1.msra.mxu0 0.0
        %1598 = vmatprep.subr.mxu0 0.0
        %1599 = vmatpush1.msra.mxu0 0.0
        %1600 = vmatprep.mubr.f32.mxu0 0.0
        %1601 = vmatmul.mubr.f32.gmra.mrb[0].mxu0 %v1535
        %v1602 = vpop.f32.mrb[0].mxu0
        %v1603 = vadd.f32 0.0, %v1602
        %v1604 = vpop.f32.mrb[0].mxu0
        %1605 = vdwg.mxu0
        %v1606 = vsub.f32 %v1535, %v1603
        %v1607 = vmul.f32 %v1606, %v1606
        %1608 = vmatprep.subr.mxu0 0.0
        %1609 = vmatpush1.msra.mxu0 %v532
        %1610 = vmatprep.subr.mxu0 0.0
        %1611 = vmatpush1.msra.mxu0 %v533
        %1612 = vmatprep.subr.mxu0 0.0
        %1613 = vmatpush1.msra.mxu0 %v534
        %1614 = vmatprep.subr.mxu0 0.0
        %1615 = vmatpush1.msra.mxu0 %v535
        %1616 = vmatprep.subr.mxu0 0.0
        %1617 = vmatpush1.msra.mxu0 %v536
        %1618 = vmatprep.subr.mxu0 0.0
        %1619 = vmatpush1.msra.mxu0 %v537
        %1620 = vmatprep.subr.mxu0 0.0
        %1621 = vmatpush1.msra.mxu0 %v538
        %1622 = vmatprep.subr.mxu0 0.0
        %1623 = vmatpush1.msra.mxu0 %v539
        %1624 = vmatprep.subr.mxu0 0.0
        %1625 = vmatpush1.msra.mxu0 %v540
        %1626 = vmatprep.subr.mxu0 0.0
        %1627 = vmatpush1.msra.mxu0 %v541
        %1628 = vmatprep.subr.mxu0 0.0
        %1629 = vmatpush1.msra.mxu0 %v542
        %1630 = vmatprep.subr.mxu0 0.0
        %1631 = vmatpush1.msra.mxu0 %v543
        %1632 = vmatprep.subr.mxu0 0.0
        %1633 = vmatpush1.msra.mxu0 %v544
        %1634 = vmatprep.subr.mxu0 0.0
        %1635 = vmatpush1.msra.mxu0 %v545
        %1636 = vmatprep.subr.mxu0 0.0
        %1637 = vmatpush1.msra.mxu0 %v546
        %1638 = vmatprep.subr.mxu0 0.0
        %1639 = vmatpush1.msra.mxu0 %v547
        %1640 = vmatprep.subr.mxu0 0.0
        %1641 = vmatpush1.msra.mxu0 0.0
        %1642 = vmatprep.subr.mxu0 0.0
        %1643 = vmatpush1.msra.mxu0 0.0
        %1644 = vmatprep.subr.mxu0 0.0
        %1645 = vmatpush1.msra.mxu0 0.0
        %1646 = vmatprep.subr.mxu0 0.0
        %1647 = vmatpush1.msra.mxu0 0.0
        %1648 = vmatprep.subr.mxu0 0.0
        %1649 = vmatpush1.msra.mxu0 0.0
        %1650 = vmatprep.subr.mxu0 0.0
        %1651 = vmatpush1.msra.mxu0 0.0
        %1652 = vmatprep.subr.mxu0 0.0
        %1653 = vmatpush1.msra.mxu0 0.0
        %1654 = vmatprep.subr.mxu0 0.0
        %1655 = vmatpush1.msra.mxu0 0.0
        %1656 = vmatprep.subr.mxu0 0.0
        %1657 = vmatpush1.msra.mxu0 0.0
        %1658 = vmatprep.subr.mxu0 0.0
        %1659 = vmatpush1.msra.mxu0 0.0
        %1660 = vmatprep.subr.mxu0 0.0
        %1661 = vmatpush1.msra.mxu0 0.0
        %1662 = vmatprep.subr.mxu0 0.0
        %1663 = vmatpush1.msra.mxu0 0.0
        %1664 = vmatprep.subr.mxu0 0.0
        %1665 = vmatpush1.msra.mxu0 0.0
        %1666 = vmatprep.subr.mxu0 0.0
        %1667 = vmatpush1.msra.mxu0 0.0
        %1668 = vmatprep.subr.mxu0 0.0
        %1669 = vmatpush1.msra.mxu0 0.0
        %1670 = vmatprep.subr.mxu0 0.0
        %1671 = vmatpush1.msra.mxu0 0.0
        %1672 = vmatprep.mubr.f32.mxu0 0.0
        %1673 = vmatmul.mubr.f32.gmra.mrb[0].mxu0 %v1607
        %v1674 = vpop.f32.mrb[0].mxu0
        %v1675 = vadd.f32 1e-06, %v1674
        %v1676 = vpop.f32.mrb[0].mxu0
        %1677 = vdwg.mxu0
        %v1678 = vrsqrt.pop %v1675
        %v1679 = vmul.f32 %v1606, %v1678
        %v1680 = vlaneseq
        %v1681 = vshrl.u32 %v1680, 7
        %v1682 = vsub.s32 2, %v1681
        %v1683 = vrot.slane %v531, %v1682
        %v1684 = vmul.f32 %v1679, %v1683
        %v1685 = vlaneseq
        %v1686 = vshrl.u32 %v1685, 7
        %v1687 = vsub.s32 3, %v1686
        %v1688 = vrot.slane %v531, %v1687
        %v1689 = vadd.f32 %v1684, %v1688
        %v1690 = vpack.c.bf16 %v1689, %v1689
        %v1691 = vld [vmem:[#allocation13] sm:$0xff]
        %v1692 = vld [vmem:[#allocation13 + $0x8] sm:$0xff]
        %v1693 = vld [vmem:[#allocation13 + $0x10] sm:$0xff]
        %v1694 = vld [vmem:[#allocation13 + $0x18] sm:$0xff]
        %v1695 = vld [vmem:[#allocation13 + $0x20] sm:$0xff]
        %v1696 = vld [vmem:[#allocation13 + $0x28] sm:$0xff]
        %v1697 = vld [vmem:[#allocation13 + $0x30] sm:$0xff]
        %v1698 = vld [vmem:[#allocation13 + $0x38] sm:$0xff]
        %v1699 = vld [vmem:[#allocation13 + $0x40] sm:$0xff]
        %v1700 = vld [vmem:[#allocation13 + $0x48] sm:$0xff]
        %v1701 = vld [vmem:[#allocation13 + $0x50] sm:$0xff]
        %v1702 = vld [vmem:[#allocation13 + $0x58] sm:$0xff]
        %v1703 = vld [vmem:[#allocation13 + $0x60] sm:$0xff]
        %v1704 = vld [vmem:[#allocation13 + $0x68] sm:$0xff]
        %v1705 = vld [vmem:[#allocation13 + $0x70] sm:$0xff]
        %v1706 = vld [vmem:[#allocation13 + $0x78] sm:$0xff]
        %v1707 = vld [vmem:[#allocation13 + $0x80] sm:$0xff]
        %v1708 = vld [vmem:[#allocation13 + $0x88] sm:$0xff]
        %v1709 = vld [vmem:[#allocation13 + $0x90] sm:$0xff]
        %v1710 = vld [vmem:[#allocation13 + $0x98] sm:$0xff]
        %v1711 = vld [vmem:[#allocation13 + $0xa0] sm:$0xff]
        %v1712 = vld [vmem:[#allocation13 + $0xa8] sm:$0xff]
        %v1713 = vld [vmem:[#allocation13 + $0xb0] sm:$0xff]
        %v1714 = vld [vmem:[#allocation13 + $0xb8] sm:$0xff]
        %v1715 = vld [vmem:[#allocation13 + $0xc0] sm:$0xff]
        %v1716 = vld [vmem:[#allocation13 + $0xc8] sm:$0xff]
        %v1717 = vld [vmem:[#allocation13 + $0xd0] sm:$0xff]
        %v1718 = vld [vmem:[#allocation13 + $0xd8] sm:$0xff]
        %v1719 = vld [vmem:[#allocation13 + $0xe0] sm:$0xff]
        %v1720 = vld [vmem:[#allocation13 + $0xe8] sm:$0xff]
        %v1721 = vld [vmem:[#allocation13 + $0xf0] sm:$0xff]
        %v1722 = vld [vmem:[#allocation13 + $0xf8] sm:$0xff]
        %v1723 = vld [vmem:[%s9] sm:$0xf]
        %v1725 = vlaneseq
        %v1726 = vshrl.u32 %v1725, 7
        %v1727 = vsub.s32 0, %v1726
        %v1728 = vrot.slane %v1723, %v1727
        %v1729 = vlaneseq
        %v1730 = vshrl.u32 %v1729, 7
        %v1731 = vsub.s32 1, %v1730
        %v1732 = vrot.slane %v1723, %v1731
        %v1733 = vlaneseq
        %v1734 = vshrl.u32 %v1733, 7
        %v1735 = vsub.s32 2, %v1734
        %v1736 = vrot.slane %v1723, %v1735
        %v1737 = vlaneseq
        %v1738 = vshrl.u32 %v1737, 7
        %v1739 = vsub.s32 3, %v1738
        %v1740 = vrot.slane %v1723, %v1739
        %v1777 = vunpack.c.l.b16 %v1691
        %v1778 = vunpack.c.h.b16 %v1691
        %v1779 = vunpack.c.l.b16 %v1692
        %v1780 = vunpack.c.h.b16 %v1692
        %v1781 = vunpack.c.l.b16 %v1693
        %v1782 = vunpack.c.h.b16 %v1693
        %v1783 = vunpack.c.l.b16 %v1694
        %v1784 = vunpack.c.h.b16 %v1694
        %v1785 = vunpack.c.l.b16 %v1695
        %v1786 = vunpack.c.h.b16 %v1695
        %v1787 = vunpack.c.l.b16 %v1696
        %v1788 = vunpack.c.h.b16 %v1696
        %v1789 = vunpack.c.l.b16 %v1697
        %v1790 = vunpack.c.h.b16 %v1697
        %v1791 = vunpack.c.l.b16 %v1698
        %v1792 = vunpack.c.h.b16 %v1698
        %v1793 = vunpack.c.l.b16 %v1699
        %v1794 = vunpack.c.h.b16 %v1699
        %v1795 = vunpack.c.l.b16 %v1700
        %v1796 = vunpack.c.h.b16 %v1700
        %v1797 = vunpack.c.l.b16 %v1701
        %v1798 = vunpack.c.h.b16 %v1701
        %v1799 = vunpack.c.l.b16 %v1702
        %v1800 = vunpack.c.h.b16 %v1702
        %v1801 = vunpack.c.l.b16 %v1703
        %v1802 = vunpack.c.h.b16 %v1703
        %v1803 = vunpack.c.l.b16 %v1704
        %v1804 = vunpack.c.h.b16 %v1704
        %v1805 = vunpack.c.l.b16 %v1705
        %v1806 = vunpack.c.h.b16 %v1705
        %v1807 = vunpack.c.l.b16 %v1706
        %v1808 = vunpack.c.h.b16 %v1706
        %v1809 = vunpack.c.l.b16 %v1707
        %v1810 = vunpack.c.h.b16 %v1707
        %v1811 = vunpack.c.l.b16 %v1708
        %v1812 = vunpack.c.h.b16 %v1708
        %v1813 = vunpack.c.l.b16 %v1709
        %v1814 = vunpack.c.h.b16 %v1709
        %v1815 = vunpack.c.l.b16 %v1710
        %v1816 = vunpack.c.h.b16 %v1710
        %v1817 = vunpack.c.l.b16 %v1711
        %v1818 = vunpack.c.h.b16 %v1711
        %v1819 = vunpack.c.l.b16 %v1712
        %v1820 = vunpack.c.h.b16 %v1712
        %v1821 = vunpack.c.l.b16 %v1713
        %v1822 = vunpack.c.h.b16 %v1713
        %v1823 = vunpack.c.l.b16 %v1714
        %v1824 = vunpack.c.h.b16 %v1714
        %v1825 = vunpack.c.l.b16 %v1715
        %v1826 = vunpack.c.h.b16 %v1715
        %v1827 = vunpack.c.l.b16 %v1716
        %v1828 = vunpack.c.h.b16 %v1716
        %v1829 = vunpack.c.l.b16 %v1717
        %v1830 = vunpack.c.h.b16 %v1717
        %v1831 = vunpack.c.l.b16 %v1718
        %v1832 = vunpack.c.h.b16 %v1718
        %v1833 = vunpack.c.l.b16 %v1719
        %v1834 = vunpack.c.h.b16 %v1719
        %v1835 = vunpack.c.l.b16 %v1720
        %v1836 = vunpack.c.h.b16 %v1720
        %v1837 = vunpack.c.l.b16 %v1721
        %v1838 = vunpack.c.h.b16 %v1721
        %v1839 = vunpack.c.l.b16 %v1722
        %v1840 = vunpack.c.h.b16 %v1722
        %v1841 = vpack.c.b16 %v1781, %v1777
        %v1842 = vpack.c.b16 %v1782, %v1778
        %v1843 = vpack.c.b16 %v1783, %v1779
        %v1844 = vpack.c.b16 %v1784, %v1780
        %v1845 = vpack.c.b16 %v1789, %v1785
        %v1846 = vpack.c.b16 %v1790, %v1786
        %v1847 = vpack.c.b16 %v1791, %v1787
        %v1848 = vpack.c.b16 %v1792, %v1788
        %v1849 = vpack.c.b16 %v1797, %v1793
        %v1850 = vpack.c.b16 %v1798, %v1794
        %v1851 = vpack.c.b16 %v1799, %v1795
        %v1852 = vpack.c.b16 %v1800, %v1796
        %v1853 = vpack.c.b16 %v1805, %v1801
        %v1854 = vpack.c.b16 %v1806, %v1802
        %v1855 = vpack.c.b16 %v1807, %v1803
        %v1856 = vpack.c.b16 %v1808, %v1804
        %v1857 = vpack.c.b16 %v1813, %v1809
        %v1858 = vpack.c.b16 %v1814, %v1810
        %v1859 = vpack.c.b16 %v1815, %v1811
        %v1860 = vpack.c.b16 %v1816, %v1812
        %v1861 = vpack.c.b16 %v1821, %v1817
        %v1862 = vpack.c.b16 %v1822, %v1818
        %v1863 = vpack.c.b16 %v1823, %v1819
        %v1864 = vpack.c.b16 %v1824, %v1820
        %v1865 = vpack.c.b16 %v1829, %v1825
        %v1866 = vpack.c.b16 %v1830, %v1826
        %v1867 = vpack.c.b16 %v1831, %v1827
        %v1868 = vpack.c.b16 %v1832, %v1828
        %v1869 = vpack.c.b16 %v1837, %v1833
        %v1870 = vpack.c.b16 %v1838, %v1834
        %v1871 = vpack.c.b16 %v1839, %v1835
        %v1872 = vpack.c.b16 %v1840, %v1836
        %1905 = vmatprep.subr.bf16.mxu0 %v1842
        %1906 = vmatpush1.bf16.msra.mxu0 %v1841
        %1907 = vmatprep.subr.bf16.mxu0 %v1846
        %1908 = vmatpush1.bf16.msra.mxu0 %v1845
        %1909 = vmatprep.subr.bf16.mxu0 %v1850
        %1910 = vmatpush1.bf16.msra.mxu0 %v1849
        %1911 = vmatprep.subr.bf16.mxu0 %v1854
        %1912 = vmatpush1.bf16.msra.mxu0 %v1853
        %1913 = vmatprep.subr.bf16.mxu0 %v1858
        %1914 = vmatpush1.bf16.msra.mxu0 %v1857
        %1915 = vmatprep.subr.bf16.mxu0 %v1862
        %1916 = vmatpush1.bf16.msra.mxu0 %v1861
        %1917 = vmatprep.subr.bf16.mxu0 %v1866
        %1918 = vmatpush1.bf16.msra.mxu0 %v1865
        %1919 = vmatprep.subr.bf16.mxu0 %v1870
        %1920 = vmatpush1.bf16.msra.mxu0 %v1869
        %1921 = vmatprep.subr.bf16.mxu0 0
        %1922 = vmatpush1.bf16.msra.mxu0 0
        %1923 = vmatprep.subr.bf16.mxu0 0
        %1924 = vmatpush1.bf16.msra.mxu0 0
        %1925 = vmatprep.subr.bf16.mxu0 0
        %1926 = vmatpush1.bf16.msra.mxu0 0
        %1927 = vmatprep.subr.bf16.mxu0 0
        %1928 = vmatpush1.bf16.msra.mxu0 0
        %1929 = vmatprep.subr.bf16.mxu0 0
        %1930 = vmatpush1.bf16.msra.mxu0 0
        %1931 = vmatprep.subr.bf16.mxu0 0
        %1932 = vmatpush1.bf16.msra.mxu0 0
        %1933 = vmatprep.subr.bf16.mxu0 0
        %1934 = vmatpush1.bf16.msra.mxu0 0
        %1935 = vmatprep.subr.bf16.mxu0 0
        %1936 = vmatpush1.bf16.msra.mxu0 0
        %1937 = vmatprep.mubr.bf16.mxu0 0
        %1938 = vmatmul.mubr.bf16.gmra.mrb[0].mxu0 %v1690
        %v1939 = vpop.f32.mrb[0].mxu0
        %v1940 = vadd.f32 %v1728, %v1939
        %v1941 = vpop.f32.mrb[0].mxu0
        %v1942 = vadd.f32 %v1732, %v1941
        %v1943 = vpop.f32.mrb[0].mxu0
        %v1944 = vpop.f32.mrb[0].mxu0
        %1945 = vdwg.mxu0
        %1946 = vmatprep.subr.bf16.mxu0 %v1844
        %1947 = vmatpush1.bf16.msra.mxu0 %v1843
        %1948 = vmatprep.subr.bf16.mxu0 %v1848
        %1949 = vmatpush1.bf16.msra.mxu0 %v1847
        %1950 = vmatprep.subr.bf16.mxu0 %v1852
        %1951 = vmatpush1.bf16.msra.mxu0 %v1851
        %1952 = vmatprep.subr.bf16.mxu0 %v1856
        %1953 = vmatpush1.bf16.msra.mxu0 %v1855
        %1954 = vmatprep.subr.bf16.mxu0 %v1860
        %1955 = vmatpush1.bf16.msra.mxu0 %v1859
        %1956 = vmatprep.subr.bf16.mxu0 %v1864
        %1957 = vmatpush1.bf16.msra.mxu0 %v1863
        %1958 = vmatprep.subr.bf16.mxu0 %v1868
        %1959 = vmatpush1.bf16.msra.mxu0 %v1867
        %1960 = vmatprep.subr.bf16.mxu0 %v1872
        %1961 = vmatpush1.bf16.msra.mxu0 %v1871
        %1962 = vmatprep.subr.bf16.mxu0 0
        %1963 = vmatpush1.bf16.msra.mxu0 0
        %1964 = vmatprep.subr.bf16.mxu0 0
        %1965 = vmatpush1.bf16.msra.mxu0 0
        %1966 = vmatprep.subr.bf16.mxu0 0
        %1967 = vmatpush1.bf16.msra.mxu0 0
        %1968 = vmatprep.subr.bf16.mxu0 0
        %1969 = vmatpush1.bf16.msra.mxu0 0
        %1970 = vmatprep.subr.bf16.mxu0 0
        %1971 = vmatpush1.bf16.msra.mxu0 0
        %1972 = vmatprep.subr.bf16.mxu0 0
        %1973 = vmatpush1.bf16.msra.mxu0 0
        %1974 = vmatprep.subr.bf16.mxu0 0
        %1975 = vmatpush1.bf16.msra.mxu0 0
        %1976 = vmatprep.subr.bf16.mxu0 0
        %1977 = vmatpush1.bf16.msra.mxu0 0
        %1978 = vmatprep.mubr.bf16.mxu0 0
        %1979 = vmatmul.mubr.bf16.gmra.mrb[0].mxu0 %v1690
        %v1980 = vpop.f32.mrb[0].mxu0
        %v1981 = vadd.f32 %v1736, %v1980
        %v1982 = vpop.f32.mrb[0].mxu0
        %v1983 = vadd.f32 %v1740, %v1982
        %v1984 = vpop.f32.mrb[0].mxu0
        %v1985 = vpop.f32.mrb[0].mxu0
        %1986 = vdwg.mxu0
        %v1987 = vmul.f32 %v1940, 0.5
        %v1988 = vmul.f32 %v1942, 0.5
        %v1989 = vmul.f32 %v1981, 0.5
        %v1990 = vmul.f32 %v1983, 0.5
        %v1991 = vmul.f32 %v1940, 0.70710677
        %v1992 = vmul.f32 %v1942, 0.70710677
        %v1993 = vmul.f32 %v1981, 0.70710677
        %v1994 = vmul.f32 %v1983, 0.70710677
        %v1995 = vand.u32 2147483647, %v1991
        %v1996 = vand.u32 2147483647, %v1992
        %v1997 = vand.u32 2147483647, %v1993
        %v1998 = vand.u32 2147483647, %v1994
        %v1999 = vmul.f32 %v1995, 0.3275911
        %v2000 = vmul.f32 %v1996, 0.3275911
        %v2001 = vmul.f32 %v1997, 0.3275911
        %v2002 = vmul.f32 %v1998, 0.3275911
        %v2003 = vadd.f32 %v1999, 1.0
        %v2004 = vadd.f32 %v2000, 1.0
        %v2005 = vadd.f32 %v2001, 1.0
        %v2006 = vadd.f32 %v2002, 1.0
        %v2007 = vrcp.pop %v2003
        %v2008 = vmul.f32 1.0, %v2007
        %v2009 = vrcp.pop %v2004
        %v2010 = vmul.f32 1.0, %v2009
        %v2011 = vrcp.pop %v2005
        %v2012 = vmul.f32 1.0, %v2011
        %v2013 = vrcp.pop %v2006
        %v2014 = vmul.f32 1.0, %v2013
        %v2015 = vmul.f32 %v2008, 1.0614054
        %v2016 = vmul.f32 %v2010, 1.0614054
        %v2017 = vmul.f32 %v2012, 1.0614054
        %v2018 = vmul.f32 %v2014, 1.0614054
        %v2019 = vadd.f32 %v2015, -1.4531521
        %v2020 = vadd.f32 %v2016, -1.4531521
        %v2021 = vadd.f32 %v2017, -1.4531521
        %v2022 = vadd.f32 %v2018, -1.4531521
        %v2023 = vmul.f32 %v2019, %v2008
        %v2024 = vmul.f32 %v2020, %v2010
        %v2025 = vmul.f32 %v2021, %v2012
        %v2026 = vmul.f32 %v2022, %v2014
        %v2027 = vadd.f32 %v2023, 1.4214138
        %v2028 = vadd.f32 %v2024, 1.4214138
        %v2029 = vadd.f32 %v2025, 1.4214138
        %v2030 = vadd.f32 %v2026, 1.4214138
        %v2031 = vmul.f32 %v2027, %v2008
        %v2032 = vmul.f32 %v2028, %v2010
        %v2033 = vmul.f32 %v2029, %v2012
        %v2034 = vmul.f32 %v2030, %v2014
        %v2035 = vadd.f32 %v2031, -0.28449672
        %v2036 = vadd.f32 %v2032, -0.28449672
        %v2037 = vadd.f32 %v2033, -0.28449672
        %v2038 = vadd.f32 %v2034, -0.28449672
        %v2039 = vmul.f32 %v2035, %v2008
        %v2040 = vmul.f32 %v2036, %v2010
        %v2041 = vmul.f32 %v2037, %v2012
        %v2042 = vmul.f32 %v2038, %v2014
        %v2043 = vadd.f32 %v2039, 0.2548296
        %v2044 = vadd.f32 %v2040, 0.2548296
        %v2045 = vadd.f32 %v2041, 0.2548296
        %v2046 = vadd.f32 %v2042, 0.2548296
        %v2047 = vmul.f32 %v2043, %v2008
        %v2048 = vmul.f32 %v2044, %v2010
        %v2049 = vmul.f32 %v2045, %v2012
        %v2050 = vmul.f32 %v2046, %v2014
        %v2051 = vsub.f32 0.0, %v1995
        %v2052 = vsub.f32 0.0, %v1996
        %v2053 = vsub.f32 0.0, %v1997
        %v2054 = vsub.f32 0.0, %v1998
        %v2055 = vmul.f32 %v2051, %v1995
        %v2056 = vmul.f32 %v2052, %v1996
        %v2057 = vmul.f32 %v2053, %v1997
        %v2058 = vmul.f32 %v2054, %v1998
        %v2059 = vmul.f32 %v2055, 1.442695
        %v2060 = vpow.pop %v2059
        %v2061 = vmul.f32 %v2056, 1.442695
        %v2062 = vpow.pop %v2061
        %v2063 = vmul.f32 %v2057, 1.442695
        %v2064 = vpow.pop %v2063
        %v2065 = vmul.f32 %v2058, 1.442695
        %v2066 = vpow.pop %v2065
        %v2067 = vmul.f32 %v2047, %v2060
        %v2068 = vmul.f32 %v2048, %v2062
        %v2069 = vmul.f32 %v2049, %v2064
        %v2070 = vmul.f32 %v2050, %v2066
        %v2071 = vsub.f32 1.0, %v2067
        %v2072 = vsub.f32 1.0, %v2068
        %v2073 = vsub.f32 1.0, %v2069
        %v2074 = vsub.f32 1.0, %v2070
        %vm2075 = vcmp.ge.f32.partialorder %v1991, 0.0
        %vm2076 = vcmp.ge.f32.partialorder %v1992, 0.0
        %vm2077 = vcmp.ge.f32.partialorder %v1993, 0.0
        %vm2078 = vcmp.ge.f32.partialorder %v1994, 0.0
        %v2079 = vsub.f32 0.0, %v2071
        %v2080 = vsub.f32 0.0, %v2072
        %v2081 = vsub.f32 0.0, %v2073
        %v2082 = vsub.f32 0.0, %v2074
        %v2083 = vsel %vm2075, %v2071, %v2079
        %v2084 = vsel %vm2076, %v2072, %v2080
        %v2085 = vsel %vm2077, %v2073, %v2081
        %v2086 = vsel %vm2078, %v2074, %v2082
        %v2087 = vadd.f32 %v2083, 1.0
        %v2088 = vadd.f32 %v2084, 1.0
        %v2089 = vadd.f32 %v2085, 1.0
        %v2090 = vadd.f32 %v2086, 1.0
        %v2091 = vmul.f32 %v1987, %v2087
        %v2092 = vmul.f32 %v1988, %v2088
        %v2093 = vmul.f32 %v1989, %v2089
        %v2094 = vmul.f32 %v1990, %v2090
        %v2095 = vpack.c.bf16 %v2091, %v2091
        %v2096 = vpack.c.bf16 %v2092, %v2092
        %v2097 = vpack.c.bf16 %v2093, %v2093
        %v2098 = vpack.c.bf16 %v2094, %v2094
        %v2099 = vld [vmem:[#allocation14] sm:$0xf]
        %v2100 = vld [vmem:[#allocation14 + $0x4] sm:$0xf]
        %v2101 = vld [vmem:[#allocation14 + $0x8] sm:$0xf]
        %v2102 = vld [vmem:[#allocation14 + $0xc] sm:$0xf]
        %v2103 = vld [vmem:[#allocation14 + $0x10] sm:$0xf]
        %v2104 = vld [vmem:[#allocation14 + $0x14] sm:$0xf]
        %v2105 = vld [vmem:[#allocation14 + $0x18] sm:$0xf]
        %v2106 = vld [vmem:[#allocation14 + $0x1c] sm:$0xf]
        %v2107 = vld [vmem:[#allocation14 + $0x20] sm:$0xf]
        %v2108 = vld [vmem:[#allocation14 + $0x24] sm:$0xf]
        %v2109 = vld [vmem:[#allocation14 + $0x28] sm:$0xf]
        %v2110 = vld [vmem:[#allocation14 + $0x2c] sm:$0xf]
        %v2111 = vld [vmem:[#allocation14 + $0x30] sm:$0xf]
        %v2112 = vld [vmem:[#allocation14 + $0x34] sm:$0xf]
        %v2113 = vld [vmem:[#allocation14 + $0x38] sm:$0xf]
        %v2114 = vld [vmem:[#allocation14 + $0x3c] sm:$0xf]
        %v2115 = vld [vmem:[#allocation14 + $0x40] sm:$0xf]
        %v2116 = vld [vmem:[#allocation14 + $0x44] sm:$0xf]
        %v2117 = vld [vmem:[#allocation14 + $0x48] sm:$0xf]
        %v2118 = vld [vmem:[#allocation14 + $0x4c] sm:$0xf]
        %v2119 = vld [vmem:[#allocation14 + $0x50] sm:$0xf]
        %v2120 = vld [vmem:[#allocation14 + $0x54] sm:$0xf]
        %v2121 = vld [vmem:[#allocation14 + $0x58] sm:$0xf]
        %v2122 = vld [vmem:[#allocation14 + $0x5c] sm:$0xf]
        %v2123 = vld [vmem:[#allocation14 + $0x60] sm:$0xf]
        %v2124 = vld [vmem:[#allocation14 + $0x64] sm:$0xf]
        %v2125 = vld [vmem:[#allocation14 + $0x68] sm:$0xf]
        %v2126 = vld [vmem:[#allocation14 + $0x6c] sm:$0xf]
        %v2127 = vld [vmem:[#allocation14 + $0x70] sm:$0xf]
        %v2128 = vld [vmem:[#allocation14 + $0x74] sm:$0xf]
        %v2129 = vld [vmem:[#allocation14 + $0x78] sm:$0xf]
        %v2130 = vld [vmem:[#allocation14 + $0x7c] sm:$0xf]
        %v2131 = vld [vmem:[#allocation14 + $0x80] sm:$0xf]
        %v2132 = vld [vmem:[#allocation14 + $0x84] sm:$0xf]
        %v2133 = vld [vmem:[#allocation14 + $0x88] sm:$0xf]
        %v2134 = vld [vmem:[#allocation14 + $0x8c] sm:$0xf]
        %v2135 = vld [vmem:[#allocation14 + $0x90] sm:$0xf]
        %v2136 = vld [vmem:[#allocation14 + $0x94] sm:$0xf]
        %v2137 = vld [vmem:[#allocation14 + $0x98] sm:$0xf]
        %v2138 = vld [vmem:[#allocation14 + $0x9c] sm:$0xf]
        %v2139 = vld [vmem:[#allocation14 + $0xa0] sm:$0xf]
        %v2140 = vld [vmem:[#allocation14 + $0xa4] sm:$0xf]
        %v2141 = vld [vmem:[#allocation14 + $0xa8] sm:$0xf]
        %v2142 = vld [vmem:[#allocation14 + $0xac] sm:$0xf]
        %v2143 = vld [vmem:[#allocation14 + $0xb0] sm:$0xf]
        %v2144 = vld [vmem:[#allocation14 + $0xb4] sm:$0xf]
        %v2145 = vld [vmem:[#allocation14 + $0xb8] sm:$0xf]
        %v2146 = vld [vmem:[#allocation14 + $0xbc] sm:$0xf]
        %v2147 = vld [vmem:[#allocation14 + $0xc0] sm:$0xf]
        %v2148 = vld [vmem:[#allocation14 + $0xc4] sm:$0xf]
        %v2149 = vld [vmem:[#allocation14 + $0xc8] sm:$0xf]
        %v2150 = vld [vmem:[#allocation14 + $0xcc] sm:$0xf]
        %v2151 = vld [vmem:[#allocation14 + $0xd0] sm:$0xf]
        %v2152 = vld [vmem:[#allocation14 + $0xd4] sm:$0xf]
        %v2153 = vld [vmem:[#allocation14 + $0xd8] sm:$0xf]
        %v2154 = vld [vmem:[#allocation14 + $0xdc] sm:$0xf]
        %v2155 = vld [vmem:[#allocation14 + $0xe0] sm:$0xf]
        %v2156 = vld [vmem:[#allocation14 + $0xe4] sm:$0xf]
        %v2157 = vld [vmem:[#allocation14 + $0xe8] sm:$0xf]
        %v2158 = vld [vmem:[#allocation14 + $0xec] sm:$0xf]
        %v2159 = vld [vmem:[#allocation14 + $0xf0] sm:$0xf]
        %v2160 = vld [vmem:[#allocation14 + $0xf4] sm:$0xf]
        %v2161 = vld [vmem:[#allocation14 + $0xf8] sm:$0xf]
        %v2162 = vld [vmem:[#allocation14 + $0xfc] sm:$0xf]
        %v2163 = vld [vmem:[%s11] sm:$0x1]
        %v2165 = vlaneseq
        %v2166 = vshrl.u32 %v2165, 7
        %v2167 = vsub.s32 0, %v2166
        %v2168 = vrot.slane %v2163, %v2167
        %v2234 = vunpack.c.l.b16 %v2099
        %v2235 = vunpack.c.l.b16 %v2100
        %v2236 = vunpack.c.l.b16 %v2101
        %v2237 = vunpack.c.l.b16 %v2102
        %v2238 = vunpack.c.l.b16 %v2103
        %v2239 = vunpack.c.l.b16 %v2104
        %v2240 = vunpack.c.l.b16 %v2105
        %v2241 = vunpack.c.l.b16 %v2106
        %v2242 = vunpack.c.l.b16 %v2107
        %v2243 = vunpack.c.l.b16 %v2108
        %v2244 = vunpack.c.l.b16 %v2109
        %v2245 = vunpack.c.l.b16 %v2110
        %v2246 = vunpack.c.l.b16 %v2111
        %v2247 = vunpack.c.l.b16 %v2112
        %v2248 = vunpack.c.l.b16 %v2113
        %v2249 = vunpack.c.l.b16 %v2114
        %v2250 = vunpack.c.l.b16 %v2115
        %v2251 = vunpack.c.l.b16 %v2116
        %v2252 = vunpack.c.l.b16 %v2117
        %v2253 = vunpack.c.l.b16 %v2118
        %v2254 = vunpack.c.l.b16 %v2119
        %v2255 = vunpack.c.l.b16 %v2120
        %v2256 = vunpack.c.l.b16 %v2121
        %v2257 = vunpack.c.l.b16 %v2122
        %v2258 = vunpack.c.l.b16 %v2123
        %v2259 = vunpack.c.l.b16 %v2124
        %v2260 = vunpack.c.l.b16 %v2125
        %v2261 = vunpack.c.l.b16 %v2126
        %v2262 = vunpack.c.l.b16 %v2127
        %v2263 = vunpack.c.l.b16 %v2128
        %v2264 = vunpack.c.l.b16 %v2129
        %v2265 = vunpack.c.l.b16 %v2130
        %v2266 = vunpack.c.l.b16 %v2131
        %v2267 = vunpack.c.l.b16 %v2132
        %v2268 = vunpack.c.l.b16 %v2133
        %v2269 = vunpack.c.l.b16 %v2134
        %v2270 = vunpack.c.l.b16 %v2135
        %v2271 = vunpack.c.l.b16 %v2136
        %v2272 = vunpack.c.l.b16 %v2137
        %v2273 = vunpack.c.l.b16 %v2138
        %v2274 = vunpack.c.l.b16 %v2139
        %v2275 = vunpack.c.l.b16 %v2140
        %v2276 = vunpack.c.l.b16 %v2141
        %v2277 = vunpack.c.l.b16 %v2142
        %v2278 = vunpack.c.l.b16 %v2143
        %v2279 = vunpack.c.l.b16 %v2144
        %v2280 = vunpack.c.l.b16 %v2145
        %v2281 = vunpack.c.l.b16 %v2146
        %v2282 = vunpack.c.l.b16 %v2147
        %v2283 = vunpack.c.l.b16 %v2148
        %v2284 = vunpack.c.l.b16 %v2149
        %v2285 = vunpack.c.l.b16 %v2150
        %v2286 = vunpack.c.l.b16 %v2151
        %v2287 = vunpack.c.l.b16 %v2152
        %v2288 = vunpack.c.l.b16 %v2153
        %v2289 = vunpack.c.l.b16 %v2154
        %v2290 = vunpack.c.l.b16 %v2155
        %v2291 = vunpack.c.l.b16 %v2156
        %v2292 = vunpack.c.l.b16 %v2157
        %v2293 = vunpack.c.l.b16 %v2158
        %v2294 = vunpack.c.l.b16 %v2159
        %v2295 = vunpack.c.l.b16 %v2160
        %v2296 = vunpack.c.l.b16 %v2161
        %v2297 = vunpack.c.l.b16 %v2162
        %v2298 = vpack.c.b16 %v2235, %v2234
        %v2299 = vpack.c.b16 %v2237, %v2236
        %v2300 = vpack.c.b16 %v2239, %v2238
        %v2301 = vpack.c.b16 %v2241, %v2240
        %v2302 = vpack.c.b16 %v2243, %v2242
        %v2303 = vpack.c.b16 %v2245, %v2244
        %v2304 = vpack.c.b16 %v2247, %v2246
        %v2305 = vpack.c.b16 %v2249, %v2248
        %v2306 = vpack.c.b16 %v2251, %v2250
        %v2307 = vpack.c.b16 %v2253, %v2252
        %v2308 = vpack.c.b16 %v2255, %v2254
        %v2309 = vpack.c.b16 %v2257, %v2256
        %v2310 = vpack.c.b16 %v2259, %v2258
        %v2311 = vpack.c.b16 %v2261, %v2260
        %v2312 = vpack.c.b16 %v2263, %v2262
        %v2313 = vpack.c.b16 %v2265, %v2264
        %v2314 = vpack.c.b16 %v2267, %v2266
        %v2315 = vpack.c.b16 %v2269, %v2268
        %v2316 = vpack.c.b16 %v2271, %v2270
        %v2317 = vpack.c.b16 %v2273, %v2272
        %v2318 = vpack.c.b16 %v2275, %v2274
        %v2319 = vpack.c.b16 %v2277, %v2276
        %v2320 = vpack.c.b16 %v2279, %v2278
        %v2321 = vpack.c.b16 %v2281, %v2280
        %v2322 = vpack.c.b16 %v2283, %v2282
        %v2323 = vpack.c.b16 %v2285, %v2284
        %v2324 = vpack.c.b16 %v2287, %v2286
        %v2325 = vpack.c.b16 %v2289, %v2288
        %v2326 = vpack.c.b16 %v2291, %v2290
        %v2327 = vpack.c.b16 %v2293, %v2292
        %v2328 = vpack.c.b16 %v2295, %v2294
        %v2329 = vpack.c.b16 %v2297, %v2296
        %2362 = vmatprep.subr.bf16.mxu0 0
        %2363 = vmatpush1.bf16.msra.mxu0 %v2298
        %2364 = vmatprep.subr.bf16.mxu0 0
        %2365 = vmatpush1.bf16.msra.mxu0 %v2299
        %2366 = vmatprep.subr.bf16.mxu0 0
        %2367 = vmatpush1.bf16.msra.mxu0 %v2300
        %2368 = vmatprep.subr.bf16.mxu0 0
        %2369 = vmatpush1.bf16.msra.mxu0 %v2301
        %2370 = vmatprep.subr.bf16.mxu0 0
        %2371 = vmatpush1.bf16.msra.mxu0 %v2302
        %2372 = vmatprep.subr.bf16.mxu0 0
        %2373 = vmatpush1.bf16.msra.mxu0 %v2303
        %2374 = vmatprep.subr.bf16.mxu0 0
        %2375 = vmatpush1.bf16.msra.mxu0 %v2304
        %2376 = vmatprep.subr.bf16.mxu0 0
        %2377 = vmatpush1.bf16.msra.mxu0 %v2305
        %2378 = vmatprep.subr.bf16.mxu0 0
        %2379 = vmatpush1.bf16.msra.mxu0 %v2306
        %2380 = vmatprep.subr.bf16.mxu0 0
        %2381 = vmatpush1.bf16.msra.mxu0 %v2307
        %2382 = vmatprep.subr.bf16.mxu0 0
        %2383 = vmatpush1.bf16.msra.mxu0 %v2308
        %2384 = vmatprep.subr.bf16.mxu0 0
        %2385 = vmatpush1.bf16.msra.mxu0 %v2309
        %2386 = vmatprep.subr.bf16.mxu0 0
        %2387 = vmatpush1.bf16.msra.mxu0 %v2310
        %2388 = vmatprep.subr.bf16.mxu0 0
        %2389 = vmatpush1.bf16.msra.mxu0 %v2311
        %2390 = vmatprep.subr.bf16.mxu0 0
        %2391 = vmatpush1.bf16.msra.mxu0 %v2312
        %2392 = vmatprep.subr.bf16.mxu0 0
        %2393 = vmatpush1.bf16.msra.mxu0 %v2313
        %2394 = vmatprep.mubr.bf16.mxu0 %v2096
        %2395 = vmatmul.mubr.bf16.gmra.mrb[0].mxu0 %v2095
        %v2396 = vpop.f32.mrb[0].mxu0
        %v2397 = vadd.f32 %v2168, %v2396
        %v2398 = vpop.f32.mrb[0].mxu0
        %v2399 = vpop.f32.mrb[0].mxu0
        %v2400 = vpop.f32.mrb[0].mxu0
        %2401 = vdwg.mxu0
        %2402 = vmatprep.subr.bf16.mxu0 0
        %2403 = vmatpush1.bf16.msra.mxu0 %v2314
        %2404 = vmatprep.subr.bf16.mxu0 0
        %2405 = vmatpush1.bf16.msra.mxu0 %v2315
        %2406 = vmatprep.subr.bf16.mxu0 0
        %2407 = vmatpush1.bf16.msra.mxu0 %v2316
        %2408 = vmatprep.subr.bf16.mxu0 0
        %2409 = vmatpush1.bf16.msra.mxu0 %v2317
        %2410 = vmatprep.subr.bf16.mxu0 0
        %2411 = vmatpush1.bf16.msra.mxu0 %v2318
        %2412 = vmatprep.subr.bf16.mxu0 0
        %2413 = vmatpush1.bf16.msra.mxu0 %v2319
        %2414 = vmatprep.subr.bf16.mxu0 0
        %2415 = vmatpush1.bf16.msra.mxu0 %v2320
        %2416 = vmatprep.subr.bf16.mxu0 0
        %2417 = vmatpush1.bf16.msra.mxu0 %v2321
        %2418 = vmatprep.subr.bf16.mxu0 0
        %2419 = vmatpush1.bf16.msra.mxu0 %v2322
        %2420 = vmatprep.subr.bf16.mxu0 0
        %2421 = vmatpush1.bf16.msra.mxu0 %v2323
        %2422 = vmatprep.subr.bf16.mxu0 0
        %2423 = vmatpush1.bf16.msra.mxu0 %v2324
        %2424 = vmatprep.subr.bf16.mxu0 0
        %2425 = vmatpush1.bf16.msra.mxu0 %v2325
        %2426 = vmatprep.subr.bf16.mxu0 0
        %2427 = vmatpush1.bf16.msra.mxu0 %v2326
        %2428 = vmatprep.subr.bf16.mxu0 0
        %2429 = vmatpush1.bf16.msra.mxu0 %v2327
        %2430 = vmatprep.subr.bf16.mxu0 0
        %2431 = vmatpush1.bf16.msra.mxu0 %v2328
        %2432 = vmatprep.subr.bf16.mxu0 0
        %2433 = vmatpush1.bf16.msra.mxu0 %v2329
        %2434 = vmatprep.mubr.bf16.mxu0 %v2098
        %2435 = vmatmul.mubr.bf16.gmra.mrb[0].mxu0 %v2097
        %v2436 = vpop.f32.mrb[0].mxu0
        %v2437 = vadd.f32 %v2397, %v2436
        %v2438 = vpop.f32.mrb[0].mxu0
        %v2439 = vpop.f32.mrb[0].mxu0
        %v2440 = vpop.f32.mrb[0].mxu0
        %2441 = vdwg.mxu0
        %v2442 = vadd.f32 %v1535, %v2437
        %2443 = vst [vmem:[%s528] sm:$0xff] %v2442
        %s2444 = sand.u32 %s298, 1
        %s2445 = scalar_lea.sflag [#allocation4], %s2444
        %s2446 = sand.u32 %s298, 1
        %s2447 = smul.addr %s2446, 8
        %s2448 = scalar_lea.vmem [#allocation16], %s2447
        // Predicated region
        $region101: #{tpu_custom_call.1} parent=67 // pred_check
          %p2449 = pneg %p308
        $region102: #{tpu_custom_call.1} parent=67 // pred_check_branch
          %2451 = sbr.rel (%p2449) target = $region104
        $region103: #{tpu_custom_call.1} parent=67 // pred_region
          %s2453 = ssub.s32 128, 128
          %2454 = vsyncadd %s2445, %s2453
          %s2455 = smul.addr %s33, 128
          %s2456 = scalar_lea.hbm %s12, %s2455
          %s2458 = sshll.u32 %s2448, 4
          %s2459 = int_to_ptr.vmem [resolvable:$true] %s2458
          %2461 = dma.vmem_to_hbm [thread:$0]  %s2459, 128, %s2456, %s2445
        $region104: #{tpu_custom_call.1} parent=67 // pred_fallthru
          _
      $region68: #{tpu_custom_call.1} parent=5 // pred_fallthru
        _
      %p2462 = scmp.le.s32.totalorder 2, %s28
      // Predicated region
      $region105: #{tpu_custom_call.1} parent=5 // pred_check
        %p2463 = pneg %p2462
      $region106: #{tpu_custom_call.1} parent=5 // pred_check_branch
        %2465 = sbr.rel (%p2463) target = $region108
      $region107: #{tpu_custom_call.1} parent=5 // pred_region
        %s2466 = ssub.s32 %s28, 2
        // Predicated region
        $region109: #{tpu_custom_call.1} parent=107 // pred_check
          %p2467 = pneg %p314
        $region110: #{tpu_custom_call.1} parent=107 // pred_check_branch
          %2469 = sbr.rel (%p2467) target = $region112
        $region111: #{tpu_custom_call.1} parent=107 // pred_region
          %s2470 = sand.u32 %s299, 1
          %s2471 = scalar_lea.sflag [#allocation4], %s2470
          %s2472 = sand.u32 %s299, 1
          %s2473 = smul.addr %s2472, 8
          %s2474 = scalar_lea.vmem [#allocation16], %s2473
          %2475 = dma.done %s2471, 128
        $region112: #{tpu_custom_call.1} parent=107 // pred_fallthru
          _
      $region108: #{tpu_custom_call.1} parent=5 // pred_fallthru
        _
    $region6: #{tpu_custom_call.1} parent=1 // loop_footer
      %s32 = sadd.s32 1, %s28
    $region7: #{tpu_custom_call.1} parent=1 // loop_footer_branch
      %27 = sbr.rel target = $region3
    $region8: #{tpu_custom_call.1} parent=1 // loop_exit
      _
    %2476 = vsyncpa [#allocation3], 1
    %s2477 = scalar_lea.sflag [#allocation3], 1
    %2478 = vsyncpa %s2477, 1
    %2479 = vsyncpa [#allocation6], 1
    %2480 = vsyncpa [#allocation9], 1
    %2481 = vsyncpa [#allocation12], 1
    %2482 = vsyncpa [#allocation15], 1
    %2483 = vsyncpa [#allocation4], 1
    %s2484 = scalar_lea.sflag [#allocation4], 1
    %2485 = vsyncpa %s2484, 1

</llo_original>
